<compile_context>
chip_gen: v6e
topology: v6e:2x2x1
jax: 0.10.0
libtpu: 0.0.40
codegen_flags: <defaults>
</compile_context>

<pallas_src>
import functools

import jax
import jax.numpy as jnp
from jax import lax
from jax.experimental import pallas as pl
from jax.experimental.pallas import tpu as pltpu


def _round_up(x, m):
    return (x + m - 1) // m * m


def _nonlocal_flash_kernel(xq_ref, xkv_ref, wg_ref, bg_ref, wv_ref, bv_ref,
                           gamma_ref, o_ref,
                           g_scr, m_scr, l_scr, acc_scr,
                           *, block_k, n_valid, mask_kv):
    """One (batch, q_tile, kv_tile) grid step of the online-softmax attention."""
    ki = pl.program_id(2)

    @pl.when(ki == 0)
    def _init():
        # Folded query projection, computed once per (batch, q_tile).
        xq = xq_ref[0]                                             # (TQ, Cp) f32
        g = jnp.dot(xq.astype(jnp.bfloat16), wg_ref[...],
                    preferred_element_type=jnp.float32) + bg_ref[...]
        g_scr[...] = g.astype(jnp.bfloat16)
        m_scr[...] = jnp.full_like(m_scr, -jnp.inf)
        l_scr[...] = jnp.zeros_like(l_scr)
        acc_scr[...] = jnp.zeros_like(acc_scr)

    # Keys/values are the raw (padded) x rows of this KV tile; the value 1x1
    # conv is applied after the attention-weighted sum (see epilogue).
    kb = xkv_ref[0].astype(jnp.bfloat16)                           # (TK, Cp)

    # energy tile: contract channel dims directly (no explicit transpose).
    s = lax.dot_general(g_scr[...], kb,
                        dimension_numbers=(((1,), (1,)), ((), ())),
                        preferred_element_type=jnp.float32)        # (TQ, TK) f32

    if mask_kv:  # static flag: only emitted when N was padded up to the tile
        col = ki * block_k + lax.broadcasted_iota(jnp.int32, s.shape, 1)
        s = jnp.where(col < n_valid, s, jnp.float32(-1e30))

    # Online softmax update.
    m_prev = m_scr[...]
    m_new = jnp.maximum(m_prev, jnp.max(s, axis=-1, keepdims=True))
    alpha = jnp.exp(m_prev - m_new)
    p = jnp.exp(s - m_new)
    l_scr[...] = alpha * l_scr[...] + jnp.sum(p, axis=-1, keepdims=True)
    acc_scr[...] = alpha * acc_scr[...] + jnp.dot(
        p.astype(jnp.bfloat16), kb, preferred_element_type=jnp.float32)
    m_scr[...] = m_new

    @pl.when(ki == pl.num_programs(2) - 1)
    def _finalize():
        inv_l = pl.reciprocal(l_scr[...], approx=True)             # (TQ, 1)
        ctx = (acc_scr[...] * inv_l).astype(jnp.bfloat16)          # (TQ, Cp)
        out = jnp.dot(ctx, wv_ref[...],
                      preferred_element_type=jnp.float32) + bv_ref[...]
        o_ref[0] = gamma_ref[0] * out + xq_ref[0]


def nonlocal_block(x_nchw, wq, bq, wk, bk, wv, bv, gamma, *, tile=128):
    """NonLocalBlock forward.

    x_nchw: (B, C, H, W) float32.  wq/wk: (C, Ci), bq/bk: (Ci,), wv: (C, C),
    bv: (C,), gamma: scalar.  `tile` ~128 is fine on v5e; 256 is a good choice
    for v6e/v7x when N is large.
    """
    B, C, H, W = x_nchw.shape
    N = H * W
    f32 = jnp.float32

    # NCHW -> (B, N, C): spatial positions on rows, channels on lanes.
    x_bnc = jnp.transpose(x_nchw.reshape(B, C, N), (0, 2, 1)).astype(f32)

    # Fold q/k 1x1 convs (see module docstring). bk drops out under softmax.
    w_g = wq.astype(f32) @ wk.astype(f32).T                        # (C, C)
    b_g = wk.astype(f32) @ bq.astype(f32)                          # (C,)

    # Lane-dense channel padding and tile-aligned spatial padding.
    c_pad = _round_up(C, 128)
    t = min(tile, _round_up(N, 16))
    n_pad = _round_up(N, t)
    n_tiles = n_pad // t

    xp = jnp.pad(x_bnc, ((0, 0), (0, n_pad - N), (0, c_pad - C)))
    w_g_p = jnp.pad(w_g, ((0, c_pad - C), (0, c_pad - C))).astype(jnp.bfloat16)
    b_g_p = jnp.pad(b_g, (0, c_pad - C)).reshape(1, c_pad)
    w_v_p = jnp.pad(wv.astype(f32),
                    ((0, c_pad - C), (0, c_pad - C))).astype(jnp.bfloat16)
    b_v_p = jnp.pad(bv.astype(f32), (0, c_pad - C)).reshape(1, c_pad)
    gamma_arr = jnp.asarray(gamma, f32).reshape(1)

    kernel = functools.partial(_nonlocal_flash_kernel,
                               block_k=t, n_valid=N, mask_kv=(n_pad != N))

    def _full2d(shape):
        return pl.BlockSpec(shape, lambda b, qi, ki: (0, 0))

    out_padded = pl.pallas_call(
        kernel,
        out_shape=jax.ShapeDtypeStruct((B, n_pad, c_pad), f32),
        grid_spec=pltpu.PrefetchScalarGridSpec(
            num_scalar_prefetch=0,
            grid=(B, n_tiles, n_tiles),
            in_specs=[
                pl.BlockSpec((1, t, c_pad), lambda b, qi, ki: (b, qi, 0)),  # x (query rows)
                pl.BlockSpec((1, t, c_pad), lambda b, qi, ki: (b, ki, 0)),  # x (key/value rows)
                _full2d((c_pad, c_pad)),                                    # folded q/k weight (bf16)
                _full2d((1, c_pad)),                                        # folded q/k bias
                _full2d((c_pad, c_pad)),                                    # value weight (bf16)
                _full2d((1, c_pad)),                                        # value bias
                pl.BlockSpec(memory_space=pltpu.MemorySpace.SMEM),          # gamma scalar
            ],
            out_specs=pl.BlockSpec((1, t, c_pad), lambda b, qi, ki: (b, qi, 0)),
            scratch_shapes=[
                pltpu.VMEM((t, c_pad), jnp.bfloat16),   # g   (folded query proj)
                pltpu.VMEM((t, 1), f32),                # m   (running max)
                pltpu.VMEM((t, 1), f32),                # l   (running sum)
                pltpu.VMEM((t, c_pad), f32),            # acc (unnormalized context)
            ]),
        compiler_params=pltpu.CompilerParams(
            dimension_semantics=("parallel", "parallel", "arbitrary"),
            vmem_limit_bytes=32 * 1024 * 1024),
    )(xp, xp, w_g_p, b_g_p, w_v_p, b_v_p, gamma_arr)

    out = out_padded[:, :N, :C]
    return jnp.transpose(out, (0, 2, 1)).reshape(B, C, H, W)


def nonlocal_block_ref(x_nchw, wq, bq, wk, bk, wv, bv, gamma):
    """Plain-JAX f32 reference mirroring the PyTorch forward exactly."""
    B, C, H, W = x_nchw.shape
    N = H * W
    x_flat = x_nchw.reshape(B, C, N)                               # (B, C, N)
    q = jnp.einsum('bcn,ci->bin', x_flat, wq) + bq[None, :, None]  # (B, Ci, N)
    k = jnp.einsum('bcn,ci->bin', x_flat, wk) + bk[None, :, None]
    v = jnp.einsum('bcn,cd->bdn', x_flat, wv) + bv[None, :, None]  # (B, C, N)
    energy = jnp.einsum('bin,bim->bnm', q, k)                      # (B, N, N)
    attn = jax.nn.softmax(energy, axis=-1)
    out = jnp.einsum('bcn,bmn->bcm', v, attn)                      # (B, C, N)
    out = out.reshape(B, C, H, W)
    return gamma * out + x_nchw


if __name__ == "__main__":
    # Small deterministic config: planes=16, reduce_ratio=8 -> inter_planes=2.
    B, C, H, W = 2, 16, 8, 8
    Ci = C // 8

    key = jax.random.PRNGKey(0)
    kx, kq, kbq, kk, kbk, kv, kbv = jax.random.split(key, 7)

    x = jax.random.normal(kx, (B, C, H, W), dtype=jnp.float32)
    wq = jax.random.normal(kq, (C, Ci), dtype=jnp.float32) * 0.1
    bq = jax.random.normal(kbq, (Ci,), dtype=jnp.float32) * 0.1
    wk = jax.random.normal(kk, (C, Ci), dtype=jnp.float32) * 0.1
    bk = jax.random.normal(kbk, (Ci,), dtype=jnp.float32) * 0.1
    wv = jax.random.normal(kv, (C, C), dtype=jnp.float32) * 0.1
    bv = jax.random.normal(kbv, (C,), dtype=jnp.float32) * 0.1
    # NOTE: the module's __init__ sets gamma = 0 (identity output); use a
    # nonzero deterministic value so the attention path is actually exercised.
    gamma = jnp.float32(0.5)

    out = nonlocal_block(x, wq, bq, wk, bk, wv, bv, gamma)
    out = jax.block_until_ready(out)

    ref = nonlocal_block_ref(x, wq, bq, wk, bk, wv, bv, gamma)
    assert out.shape == (B, C, H, W)
    # bf16 MXU operands + approx reciprocal => slightly looser tolerance.
    assert jnp.allclose(out, ref, atol=2e-2, rtol=2e-2), "mismatch vs reference"

    print("KERNEL_OK")
</pallas_src>

<mosaic_0001>
module attributes {stable_mosaic.version = 11 : i64} {
  func.func @_nonlocal_flash_kernel(%arg0: i32, %arg1: i32, %arg2: i32, %arg3: memref<1x64x128xf32, #tpu.memory_space<vmem>>, %arg4: memref<1x64x128xf32, #tpu.memory_space<vmem>>, %arg5: memref<128x128xbf16, #tpu.memory_space<vmem>>, %arg6: memref<1x128xf32, #tpu.memory_space<vmem>>, %arg7: memref<128x128xbf16, #tpu.memory_space<vmem>>, %arg8: memref<1x128xf32, #tpu.memory_space<vmem>>, %arg9: memref<1xf32, #tpu.memory_space<smem>>, %arg10: memref<1x64x128xf32, #tpu.memory_space<vmem>>, %arg11: memref<64x128xbf16, #tpu.memory_space<vmem>>, %arg12: memref<64x1xf32, #tpu.memory_space<vmem>>, %arg13: memref<64x1xf32, #tpu.memory_space<vmem>>, %arg14: memref<64x128xf32, #tpu.memory_space<vmem>>) attributes {dimension_semantics = [#tpu.dimension_semantics<parallel>, #tpu.dimension_semantics<parallel>, #tpu.dimension_semantics<arbitrary>], iteration_bounds = array<i64: 2, 1, 1>, scalar_prefetch = 0 : i64, scratch_operands = 4 : i64, tpu.core_type = #tpu.core_type<tc>, window_params = [{transform_indices = @transform_0, window_bounds = array<i64: 1, 64, 128>}, {transform_indices = @transform_1, window_bounds = array<i64: 1, 64, 128>}, {pipeline_mode = #tpu.pipeline_mode<synchronous>, transform_indices = @transform_2, window_bounds = array<i64: 128, 128>}, {pipeline_mode = #tpu.pipeline_mode<synchronous>, transform_indices = @transform_3, window_bounds = array<i64: 1, 128>}, {pipeline_mode = #tpu.pipeline_mode<synchronous>, transform_indices = @transform_4, window_bounds = array<i64: 128, 128>}, {pipeline_mode = #tpu.pipeline_mode<synchronous>, transform_indices = @transform_5, window_bounds = array<i64: 1, 128>}, {transform_indices = @transform_6, window_bounds = array<i64: 1>}, {transform_indices = @transform_7, window_bounds = array<i64: 1, 64, 128>}]} {
    %c0_i32 = arith.constant 0 : i32
    %0 = arith.cmpi eq, %arg2, %c0_i32 : i32
    %1 = arith.extui %0 : i1 to i32
    %c0_i32_0 = arith.constant 0 : i32
    %2 = arith.cmpi ne, %1, %c0_i32_0 : i32
    scf.if %2 {
      %c0_22 = arith.constant 0 : index
      %c0_23 = arith.constant 0 : index
      %c0_24 = arith.constant 0 : index
      %34 = vector.load %arg3[%c0_22, %c0_23, %c0_24] : memref<1x64x128xf32, #tpu.memory_space<vmem>>, vector<1x64x128xf32>
      %35 = vector.shape_cast %34 : vector<1x64x128xf32> to vector<64x128xf32>
      %36 = arith.truncf %35 : vector<64x128xf32> to vector<64x128xbf16>
      %c0_25 = arith.constant 0 : index
      %c0_26 = arith.constant 0 : index
      %37 = vector.load %arg5[%c0_25, %c0_26] : memref<128x128xbf16, #tpu.memory_space<vmem>>, vector<128x128xbf16>
      %cst_27 = arith.constant dense<0.000000e+00> : vector<64x128xf32>
      %38 = tpu.matmul %36, %37, %cst_27 {dimension_numbers = #tpu.dot_dimension_numbers<[1], [0], [0], [1], [0, 0, 1, 1], [], []>} : vector<64x128xbf16>, vector<128x128xbf16>, vector<64x128xf32> -> vector<64x128xf32>
      %c0_28 = arith.constant 0 : index
      %c0_29 = arith.constant 0 : index
      %39 = vector.load %arg6[%c0_28, %c0_29] : memref<1x128xf32, #tpu.memory_space<vmem>>, vector<1x128xf32>
      %40 = vector.broadcast %39 : vector<1x128xf32> to vector<64x128xf32>
      %41 = arith.addf %38, %40 : vector<64x128xf32>
      %42 = arith.truncf %41 : vector<64x128xf32> to vector<64x128xbf16>
      %c0_30 = arith.constant 0 : index
      %c0_31 = arith.constant 0 : index
      %43 = vector.load %arg11[%c0_30, %c0_31] : memref<64x128xbf16, #tpu.memory_space<vmem>>, vector<64x128xbf16>
      tpu.vector_store %arg11[%c0_30, %c0_31], %42 {strides = array<i32>} : memref<64x128xbf16, #tpu.memory_space<vmem>>, vector<64x128xbf16>,
      %cst_32 = arith.constant 0xFF800000 : f32
      %44 = vector.broadcast %cst_32 : f32 to vector<64x1xf32>
      %c0_33 = arith.constant 0 : index
      %c0_34 = arith.constant 0 : index
      %45 = vector.load %arg12[%c0_33, %c0_34] : memref<64x1xf32, #tpu.memory_space<vmem>>, vector<64x1xf32>
      tpu.vector_store %arg12[%c0_33, %c0_34], %44 {strides = array<i32>} : memref<64x1xf32, #tpu.memory_space<vmem>>, vector<64x1xf32>,
      %cst_35 = arith.constant 0.000000e+00 : f32
      %46 = vector.broadcast %cst_35 : f32 to vector<64x1xf32>
      %c0_36 = arith.constant 0 : index
      %c0_37 = arith.constant 0 : index
      %47 = vector.load %arg13[%c0_36, %c0_37] : memref<64x1xf32, #tpu.memory_space<vmem>>, vector<64x1xf32>
      tpu.vector_store %arg13[%c0_36, %c0_37], %46 {strides = array<i32>} : memref<64x1xf32, #tpu.memory_space<vmem>>, vector<64x1xf32>,
      %cst_38 = arith.constant 0.000000e+00 : f32
      %48 = vector.broadcast %cst_38 : f32 to vector<64x128xf32>
      %c0_39 = arith.constant 0 : index
      %c0_40 = arith.constant 0 : index
      %49 = vector.load %arg14[%c0_39, %c0_40] : memref<64x128xf32, #tpu.memory_space<vmem>>, vector<64x128xf32>
      tpu.vector_store %arg14[%c0_39, %c0_40], %48 {strides = array<i32>} : memref<64x128xf32, #tpu.memory_space<vmem>>, vector<64x128xf32>,
    } else {
    }
    %c0 = arith.constant 0 : index
    %c0_1 = arith.constant 0 : index
    %c0_2 = arith.constant 0 : index
    %3 = vector.load %arg4[%c0, %c0_1, %c0_2] : memref<1x64x128xf32, #tpu.memory_space<vmem>>, vector<1x64x128xf32>
    %4 = vector.shape_cast %3 : vector<1x64x128xf32> to vector<64x128xf32>
    %5 = arith.truncf %4 : vector<64x128xf32> to vector<64x128xbf16>
    %c0_3 = arith.constant 0 : index
    %c0_4 = arith.constant 0 : index
    %6 = vector.load %arg11[%c0_3, %c0_4] : memref<64x128xbf16, #tpu.memory_space<vmem>>, vector<64x128xbf16>
    %cst = arith.constant dense<0.000000e+00> : vector<64x64xf32>
    %7 = tpu.matmul %6, %5, %cst {dimension_numbers = #tpu.dot_dimension_numbers<[1], [1], [0], [0], [0, 0, 1, 0], [], []>} : vector<64x128xbf16>, vector<64x128xbf16>, vector<64x64xf32> -> vector<64x64xf32>
    %c0_5 = arith.constant 0 : index
    %c0_6 = arith.constant 0 : index
    %8 = vector.load %arg12[%c0_5, %c0_6] : memref<64x1xf32, #tpu.memory_space<vmem>>, vector<64x1xf32>
    %cst_7 = arith.constant dense<0xFF800000> : vector<64xf32>
    %9 = vector.multi_reduction <maximumf>, %7, %cst_7 [1] : vector<64x64xf32> to vector<64xf32>
    %10 = vector.shape_cast %9 : vector<64xf32> to vector<64x1xf32>
    %11 = arith.maximumf %8, %10 : vector<64x1xf32>
    %12 = arith.subf %8, %11 : vector<64x1xf32>
    %13 = math.exp %12 : vector<64x1xf32>
    %14 = vector.broadcast %11 : vector<64x1xf32> to vector<64x64xf32>
    %15 = arith.subf %7, %14 : vector<64x64xf32>
    %16 = math.exp %15 : vector<64x64xf32>
    %c0_8 = arith.constant 0 : index
    %c0_9 = arith.constant 0 : index
    %17 = vector.load %arg13[%c0_8, %c0_9] : memref<64x1xf32, #tpu.memory_space<vmem>>, vector<64x1xf32>
    %18 = arith.mulf %13, %17 : vector<64x1xf32>
    %cst_10 = arith.constant dense<0.000000e+00> : vector<64xf32>
    %19 = vector.multi_reduction <add>, %16, %cst_10 [1] : vector<64x64xf32> to vector<64xf32>
    %20 = vector.shape_cast %19 : vector<64xf32> to vector<64x1xf32>
    %21 = arith.addf %18, %20 : vector<64x1xf32>
    %c0_11 = arith.constant 0 : index
    %c0_12 = arith.constant 0 : index
    %22 = vector.load %arg13[%c0_11, %c0_12] : memref<64x1xf32, #tpu.memory_space<vmem>>, vector<64x1xf32>
    tpu.vector_store %arg13[%c0_11, %c0_12], %21 {strides = array<i32>} : memref<64x1xf32, #tpu.memory_space<vmem>>, vector<64x1xf32>,
    %c0_13 = arith.constant 0 : index
    %c0_14 = arith.constant 0 : index
    %23 = vector.load %arg14[%c0_13, %c0_14] : memref<64x128xf32, #tpu.memory_space<vmem>>, vector<64x128xf32>
    %24 = vector.broadcast %13 : vector<64x1xf32> to vector<64x128xf32>
    %25 = arith.mulf %24, %23 : vector<64x128xf32>
    %26 = arith.truncf %16 : vector<64x64xf32> to vector<64x64xbf16>
    %cst_15 = arith.constant dense<0.000000e+00> : vector<64x128xf32>
    %27 = tpu.matmul %26, %5, %cst_15 {dimension_numbers = #tpu.dot_dimension_numbers<[1], [0], [0], [1], [0, 0, 1, 1], [], []>} : vector<64x64xbf16>, vector<64x128xbf16>, vector<64x128xf32> -> vector<64x128xf32>
    %28 = arith.addf %25, %27 : vector<64x128xf32>
    %c0_16 = arith.constant 0 : index
    %c0_17 = arith.constant 0 : index
    %29 = vector.load %arg14[%c0_16, %c0_17] : memref<64x128xf32, #tpu.memory_space<vmem>>, vector<64x128xf32>
    tpu.vector_store %arg14[%c0_16, %c0_17], %28 {strides = array<i32>} : memref<64x128xf32, #tpu.memory_space<vmem>>, vector<64x128xf32>,
    %c0_18 = arith.constant 0 : index
    %c0_19 = arith.constant 0 : index
    %30 = vector.load %arg12[%c0_18, %c0_19] : memref<64x1xf32, #tpu.memory_space<vmem>>, vector<64x1xf32>
    tpu.vector_store %arg12[%c0_18, %c0_19], %11 {strides = array<i32>} : memref<64x1xf32, #tpu.memory_space<vmem>>, vector<64x1xf32>,
    %c0_i32_20 = arith.constant 0 : i32
    %31 = arith.cmpi eq, %arg2, %c0_i32_20 : i32
    %32 = arith.extui %31 : i1 to i32
    %c0_i32_21 = arith.constant 0 : i32
    %33 = arith.cmpi ne, %32, %c0_i32_21 : i32
    scf.if %33 {
      %c0_22 = arith.constant 0 : index
      %c0_23 = arith.constant 0 : index
      %34 = vector.load %arg13[%c0_22, %c0_23] : memref<64x1xf32, #tpu.memory_space<vmem>>, vector<64x1xf32>
      %35 = tpu.reciprocal %34 {approx = true} : vector<64x1xf32> -> vector<64x1xf32>
      %c0_24 = arith.constant 0 : index
      %c0_25 = arith.constant 0 : index
      %36 = vector.load %arg14[%c0_24, %c0_25] : memref<64x128xf32, #tpu.memory_space<vmem>>, vector<64x128xf32>
      %37 = vector.broadcast %35 : vector<64x1xf32> to vector<64x128xf32>
      %38 = arith.mulf %36, %37 : vector<64x128xf32>
      %39 = arith.truncf %38 : vector<64x128xf32> to vector<64x128xbf16>
      %c0_26 = arith.constant 0 : index
      %c0_27 = arith.constant 0 : index
      %40 = vector.load %arg7[%c0_26, %c0_27] : memref<128x128xbf16, #tpu.memory_space<vmem>>, vector<128x128xbf16>
      %cst_28 = arith.constant dense<0.000000e+00> : vector<64x128xf32>
      %41 = tpu.matmul %39, %40, %cst_28 {dimension_numbers = #tpu.dot_dimension_numbers<[1], [0], [0], [1], [0, 0, 1, 1], [], []>} : vector<64x128xbf16>, vector<128x128xbf16>, vector<64x128xf32> -> vector<64x128xf32>
      %c0_29 = arith.constant 0 : index
      %c0_30 = arith.constant 0 : index
      %42 = vector.load %arg8[%c0_29, %c0_30] : memref<1x128xf32, #tpu.memory_space<vmem>>, vector<1x128xf32>
      %43 = vector.broadcast %42 : vector<1x128xf32> to vector<64x128xf32>
      %44 = arith.addf %41, %43 : vector<64x128xf32>
      %c0_31 = arith.constant 0 : index
      %45 = memref.load %arg9[%c0_31] : memref<1xf32, #tpu.memory_space<smem>>
      %46 = vector.broadcast %45 : f32 to vector<64x128xf32>
      %47 = arith.mulf %46, %44 : vector<64x128xf32>
      %c0_32 = arith.constant 0 : index
      %c0_33 = arith.constant 0 : index
      %c0_34 = arith.constant 0 : index
      %48 = vector.load %arg3[%c0_32, %c0_33, %c0_34] : memref<1x64x128xf32, #tpu.memory_space<vmem>>, vector<1x64x128xf32>
      %49 = vector.shape_cast %48 : vector<1x64x128xf32> to vector<64x128xf32>
      %50 = arith.addf %47, %49 : vector<64x128xf32>
      %c0_35 = arith.constant 0 : index
      %c0_36 = arith.constant 0 : index
      %c0_37 = arith.constant 0 : index
      %51 = vector.load %arg10[%c0_35, %c0_36, %c0_37] : memref<1x64x128xf32, #tpu.memory_space<vmem>>, vector<1x64x128xf32>
      %52 = vector.shape_cast %51 : vector<1x64x128xf32> to vector<64x128xf32>
      %53 = vector.shape_cast %50 : vector<64x128xf32> to vector<1x64x128xf32>
      tpu.vector_store %arg10[%c0_35, %c0_36, %c0_37], %53 {strides = array<i32>} : memref<1x64x128xf32, #tpu.memory_space<vmem>>, vector<1x64x128xf32>,
    } else {
    }
    return
  }
  func.func @transform_0(%arg0: i32, %arg1: i32, %arg2: i32) -> (i32, i32, i32) {
    %c0_i32 = arith.constant 0 : i32
    %c0_i32_0 = arith.constant 0 : i32
    return %arg0, %arg1, %c0_i32 : i32, i32, i32
  }
  func.func @transform_1(%arg0: i32, %arg1: i32, %arg2: i32) -> (i32, i32, i32) {
    %c0_i32 = arith.constant 0 : i32
    %c0_i32_0 = arith.constant 0 : i32
    return %arg0, %arg2, %c0_i32 : i32, i32, i32
  }
  func.func @transform_2(%arg0: i32, %arg1: i32, %arg2: i32) -> (i32, i32) {
    %c0_i32 = arith.constant 0 : i32
    %c0_i32_0 = arith.constant 0 : i32
    %c0_i32_1 = arith.constant 0 : i32
    return %c0_i32, %c0_i32_0 : i32, i32
  }
  func.func @transform_3(%arg0: i32, %arg1: i32, %arg2: i32) -> (i32, i32) {
    %c0_i32 = arith.constant 0 : i32
    %c0_i32_0 = arith.constant 0 : i32
    %c0_i32_1 = arith.constant 0 : i32
    return %c0_i32, %c0_i32_0 : i32, i32
  }
  func.func @transform_4(%arg0: i32, %arg1: i32, %arg2: i32) -> (i32, i32) {
    %c0_i32 = arith.constant 0 : i32
    %c0_i32_0 = arith.constant 0 : i32
    %c0_i32_1 = arith.constant 0 : i32
    return %c0_i32, %c0_i32_0 : i32, i32
  }
  func.func @transform_5(%arg0: i32, %arg1: i32, %arg2: i32) -> (i32, i32) {
    %c0_i32 = arith.constant 0 : i32
    %c0_i32_0 = arith.constant 0 : i32
    %c0_i32_1 = arith.constant 0 : i32
    return %c0_i32, %c0_i32_0 : i32, i32
  }
  func.func @transform_6(%arg0: i32, %arg1: i32, %arg2: i32) -> i32 {
    %c0_i32 = arith.constant 0 : i32
    %c0_i32_0 = arith.constant 0 : i32
    return %c0_i32 : i32
  }
  func.func @transform_7(%arg0: i32, %arg1: i32, %arg2: i32) -> (i32, i32, i32) {
    %c0_i32 = arith.constant 0 : i32
    %c0_i32_0 = arith.constant 0 : i32
    return %arg0, %arg1, %c0_i32 : i32, i32, i32
  }
}

</mosaic_0001>

<llo_original>
// kernel: tpu_custom_call.1
$region0: #{tpu_custom_call.1}
  #allocation0 [shape = 'u32[]', space=smem, size = 0x4, offset = 0x4, fixed_abs, tag = 'smem constant byte address 0x4 - core index']
  #allocation1 [shape = 'u32[144,128]{1,0:T(1,128)}', space=vmem, size = 0x12000, scoped, tag = 'internal scratch']
  #allocation2 [shape = 'bf16[64,128]{1,0:T(8,128)(2,1)}', space=vmem, size = 0x4000, scoped, tag = 'scratch operand']
  #allocation3 [shape = 'f32[64,1]{1,0:T(8,128)}', space=vmem, size = 0x8000, scoped, tag = 'scratch operand']
  #allocation4 [shape = 'f32[64,1]{1,0:T(8,128)}', space=vmem, size = 0x8000, scoped, tag = 'scratch operand']
  #allocation5 [shape = 'f32[64,128]{1,0:T(8,128)}', space=vmem, size = 0x8000, scoped, tag = 'scratch operand']
  #allocation6 [shape = 'f32[1]{0:T(128)S(6)}', space=smem, size = 0x200, scoped, tag = 'scoped memory for tpu_custom_call.1']
  %s0 = inlined_call_operand.hbm [shape: f32[2,64,128], index: 0, kind: input, shape index: {}]
  %s1 = inlined_call_operand.hbm [shape: f32[2,64,128], index: 1, kind: input, shape index: {}]
  %s2 = inlined_call_operand.hbm [shape: bf16[128,128], index: 2, kind: input, shape index: {}]
  %s3 = inlined_call_operand.vmem [shape: f32[1,128], index: 3, kind: input, shape index: {}]
  %s4 = inlined_call_operand.hbm [shape: bf16[128,128], index: 4, kind: input, shape index: {}]
  %s5 = inlined_call_operand.vmem [shape: f32[1,128], index: 5, kind: input, shape index: {}]
  %s6 = inlined_call_operand.<no memory space> [shape: f32[1], index: 6, kind: input, shape index: {}]
  %s7 = inlined_call_operand.hbm [shape: f32[2,64,128], index: 7, kind: output, shape index: {}]
  %s8 = sld [smem:[#allocation0]]
  $region85: #{tpu_custom_call.1} parent=0
    _
  %s10 = ssub.s32 1, %s8
  %s11 = scalar_select 0, %s10, %s8
  %12 = sst [smem:[#allocation6]] %s6
  $region1: #{tpu_custom_call.1} parent=0
    #allocation7 [shape = 'u8[65536]{0}', space=vmem, size = 0x10000, scoped, tag = 'input window, operand 0']
    #allocation8 [shape = 's32[2]{0}', space=sflag, size = 0x8, scoped, tag = 'scoped memory for tpu_custom_call.1']
    #allocation9 [shape = 's32[2]{0}', space=sflag, size = 0x8, scoped, tag = 'scoped memory for tpu_custom_call.1']
    #allocation10 [shape = 'u8[65536]{0}', space=vmem, size = 0x10000, scoped, tag = 'input window, operand 1']
    #allocation11 [shape = 's32[2]{0}', space=sflag, size = 0x8, scoped, tag = 'scoped memory for tpu_custom_call.1']
    #allocation12 [shape = 'u8[32768]{0}', space=vmem, size = 0x8000, scoped, tag = 'input window, operand 2, single buffered']
    #allocation13 [shape = 'u8[32768]{0}', space=vmem, size = 0x8000, scoped, tag = 'input window, operand 4, single buffered']
    #allocation14 [shape = 's32[1]{0}', space=sflag, size = 0x4, scoped, tag = 'scoped memory for tpu_custom_call.1']
    #allocation15 [shape = 'u8[65536]{0}', space=vmem, size = 0x10000, scoped, tag = 'output window, operand 0']
    %13 = vsyncpa [#allocation8], 0
    %s14 = scalar_lea.sflag [#allocation8], 1
    %15 = vsyncpa %s14, 0
    %16 = vsyncpa [#allocation11], 0
    %s17 = scalar_lea.sflag [#allocation11], 1
    %18 = vsyncpa %s17, 0
    %19 = vsyncpa [#allocation14], 0
    %20 = vsyncpa [#allocation9], 0
    %s21 = scalar_lea.sflag [#allocation9], 1
    %22 = vsyncpa %s21, 0
    loop: start=0, step=1, limit=4
    $region2: #{tpu_custom_call.1} parent=1 // loop_pre_header
      _
    $region3: #{tpu_custom_call.1} parent=1 // loop_header
      %s24 = sphi 0, %s28
      %p25 = scmp.ge.s32.totalorder %s24, 4
      %s31 = sphi 0, %s50
      %s32 = sphi 0, %s46
      %s33 = sphi 0, %s42
      %s34 = sphi 0, %s31
      %s35 = sphi 0, %s32
      %s36 = sphi 0, %s33
      %s37 = sphi 0, %s34
      %s38 = sphi 0, %s35
      %s39 = sphi 0, %s36
      %s55 = sphi 0, %s57
      %s58 = sphi 0, %s55
      %s59 = sphi 0, %s58
      %s75 = sphi 0, %s59
      %s83 = sphi 0, %s85
      %s86 = sphi 0, %s83
      %s87 = sphi 0, %s86
      %s103 = sphi 0, %s87
      %s107 = sphi 0, %s107
      %s109 = sphi 0, %s107
      %s110 = sphi 0, %s109
      %s124 = sphi 0, %s110
      %s128 = sphi 0, %s128
      %s130 = sphi 0, %s128
      %s131 = sphi 0, %s130
      %s145 = sphi 0, %s131
      %s149 = sphi 0, %s149
      %s151 = sphi 0, %s149
      %s152 = sphi 0, %s151
      %s166 = sphi 0, %s152
      %s170 = sphi 0, %s170
      %s172 = sphi 0, %s170
      %s173 = sphi 0, %s172
      %s187 = sphi 0, %s173
      %s191 = sphi 0, %s191
      %s193 = sphi 0, %s191
      %s194 = sphi 0, %s193
      %s208 = sphi 0, %s194
      %s216 = sphi 0, %s218
      %s219 = sphi 0, %s216
      %s220 = sphi 0, %s219
      %s236 = sphi 0, %s220
    $region4: #{tpu_custom_call.1} parent=1 // loop_header_branch
      %27 = sbr.rel (%p25) target = $region8
    $region5: #{tpu_custom_call.1} parent=1 // loop_body
      %s29 = ssub.s32 %s24, 1
      %s30 = ssub.s32 %s24, 2
      %s40 = sadd.s32 1, %s33
      %p41 = scmp.ge.s32.totalorder %s40, 1
      %s42 = scalar_select %p41, 0, %s40
      %s43 = sadd.s32 1, %s32
      %s44 = scalar_select %p41, %s43, %s32
      %p45 = scmp.ge.s32.totalorder %s44, 1
      %s46 = scalar_select %p45, 0, %s44
      %s47 = sadd.s32 1, %s31
      %s48 = scalar_select %p45, %s47, %s31
      %p49 = scmp.ge.s32.totalorder %s48, 2
      %s50 = scalar_select %p49, 0, %s48
      %s51 = ssub.s32 %s31, %s50
      %s52 = ssub.s32 %s32, %s46
      %s53 = sor.u32 %s51, %s52
      %p54 = scmp.eq.s32.totalorder %s53, 0
      %s56 = sadd.s32 %s55, 1
      %s57 = scalar_select %p54, %s55, %s56
      %p60 = pneg %p54
      %p61 = scmp.eq.s32.totalorder %s24, 1
      %p62 = por %p60, %p61
      %p63 = scmp.ne.s32.totalorder %s55, %s58
      %p64 = scmp.eq.s32.totalorder %s24, 0
      %p65 = por %p63, %p64
      %p66 = scmp.ne.s32.totalorder %s55, %s58
      %p67 = scmp.eq.s32.totalorder %s29, 1
      %p68 = por %p66, %p67
      %p69 = scmp.ne.s32.totalorder %s58, %s59
      %p70 = scmp.eq.s32.totalorder %s29, 0
      %p71 = por %p69, %p70
      %p72 = scmp.ne.s32.totalorder %s58, %s59
      %p73 = scmp.eq.s32.totalorder %s30, 1
      %p74 = por %p72, %p73
      %p76 = scmp.ne.s32.totalorder %s59, %s75
      %p77 = scmp.eq.s32.totalorder %s30, 0
      %p78 = por %p76, %p77
      %s79 = ssub.s32 %s31, %s50
      %s80 = ssub.s32 %s33, %s42
      %s81 = sor.u32 %s79, %s80
      %p82 = scmp.eq.s32.totalorder %s81, 0
      %s84 = sadd.s32 %s83, 1
      %s85 = scalar_select %p82, %s83, %s84
      %p88 = pneg %p82
      %p89 = scmp.eq.s32.totalorder %s24, 1
      %p90 = por %p88, %p89
      %p91 = scmp.ne.s32.totalorder %s83, %s86
      %p92 = scmp.eq.s32.totalorder %s24, 0
      %p93 = por %p91, %p92
      %p94 = scmp.ne.s32.totalorder %s83, %s86
      %p95 = scmp.eq.s32.totalorder %s29, 1
      %p96 = por %p94, %p95
      %p97 = scmp.ne.s32.totalorder %s86, %s87
      %p98 = scmp.eq.s32.totalorder %s29, 0
      %p99 = por %p97, %p98
      %p100 = scmp.ne.s32.totalorder %s86, %s87
      %p101 = scmp.eq.s32.totalorder %s30, 1
      %p102 = por %p100, %p101
      %p104 = scmp.ne.s32.totalorder %s87, %s103
      %p105 = scmp.eq.s32.totalorder %s30, 0
      %p106 = por %p104, %p105
      %s108 = sadd.s32 %s107, 1
      %p111 = scmp.eq.s32.totalorder %s24, 1
      %p112 = scmp.ne.s32.totalorder %s107, %s109
      %p113 = scmp.eq.s32.totalorder %s24, 0
      %p114 = por %p112, %p113
      %p115 = scmp.ne.s32.totalorder %s107, %s109
      %p116 = scmp.eq.s32.totalorder %s29, 1
      %p117 = por %p115, %p116
      %p118 = scmp.ne.s32.totalorder %s109, %s110
      %p119 = scmp.eq.s32.totalorder %s29, 0
      %p120 = por %p118, %p119
      %p121 = scmp.ne.s32.totalorder %s109, %s110
      %p122 = scmp.eq.s32.totalorder %s30, 1
      %p123 = por %p121, %p122
      %p125 = scmp.ne.s32.totalorder %s110, %s124
      %p126 = scmp.eq.s32.totalorder %s30, 0
      %p127 = por %p125, %p126
      %s129 = sadd.s32 %s128, 1
      %p132 = scmp.eq.s32.totalorder %s24, 1
      %p133 = scmp.ne.s32.totalorder %s128, %s130
      %p134 = scmp.eq.s32.totalorder %s24, 0
      %p135 = por %p133, %p134
      %p136 = scmp.ne.s32.totalorder %s128, %s130
      %p137 = scmp.eq.s32.totalorder %s29, 1
      %p138 = por %p136, %p137
      %p139 = scmp.ne.s32.totalorder %s130, %s131
      %p140 = scmp.eq.s32.totalorder %s29, 0
      %p141 = por %p139, %p140
      %p142 = scmp.ne.s32.totalorder %s130, %s131
      %p143 = scmp.eq.s32.totalorder %s30, 1
      %p144 = por %p142, %p143
      %p146 = scmp.ne.s32.totalorder %s131, %s145
      %p147 = scmp.eq.s32.totalorder %s30, 0
      %p148 = por %p146, %p147
      %s150 = sadd.s32 %s149, 1
      %p153 = scmp.eq.s32.totalorder %s24, 1
      %p154 = scmp.ne.s32.totalorder %s149, %s151
      %p155 = scmp.eq.s32.totalorder %s24, 0
      %p156 = por %p154, %p155
      %p157 = scmp.ne.s32.totalorder %s149, %s151
      %p158 = scmp.eq.s32.totalorder %s29, 1
      %p159 = por %p157, %p158
      %p160 = scmp.ne.s32.totalorder %s151, %s152
      %p161 = scmp.eq.s32.totalorder %s29, 0
      %p162 = por %p160, %p161
      %p163 = scmp.ne.s32.totalorder %s151, %s152
      %p164 = scmp.eq.s32.totalorder %s30, 1
      %p165 = por %p163, %p164
      %p167 = scmp.ne.s32.totalorder %s152, %s166
      %p168 = scmp.eq.s32.totalorder %s30, 0
      %p169 = por %p167, %p168
      %s171 = sadd.s32 %s170, 1
      %p174 = scmp.eq.s32.totalorder %s24, 1
      %p175 = scmp.ne.s32.totalorder %s170, %s172
      %p176 = scmp.eq.s32.totalorder %s24, 0
      %p177 = por %p175, %p176
      %p178 = scmp.ne.s32.totalorder %s170, %s172
      %p179 = scmp.eq.s32.totalorder %s29, 1
      %p180 = por %p178, %p179
      %p181 = scmp.ne.s32.totalorder %s172, %s173
      %p182 = scmp.eq.s32.totalorder %s29, 0
      %p183 = por %p181, %p182
      %p184 = scmp.ne.s32.totalorder %s172, %s173
      %p185 = scmp.eq.s32.totalorder %s30, 1
      %p186 = por %p184, %p185
      %p188 = scmp.ne.s32.totalorder %s173, %s187
      %p189 = scmp.eq.s32.totalorder %s30, 0
      %p190 = por %p188, %p189
      %s192 = sadd.s32 %s191, 1
      %p195 = scmp.eq.s32.totalorder %s24, 1
      %p196 = scmp.ne.s32.totalorder %s191, %s193
      %p197 = scmp.eq.s32.totalorder %s24, 0
      %p198 = por %p196, %p197
      %p199 = scmp.ne.s32.totalorder %s191, %s193
      %p200 = scmp.eq.s32.totalorder %s29, 1
      %p201 = por %p199, %p200
      %p202 = scmp.ne.s32.totalorder %s193, %s194
      %p203 = scmp.eq.s32.totalorder %s29, 0
      %p204 = por %p202, %p203
      %p205 = scmp.ne.s32.totalorder %s193, %s194
      %p206 = scmp.eq.s32.totalorder %s30, 1
      %p207 = por %p205, %p206
      %p209 = scmp.ne.s32.totalorder %s194, %s208
      %p210 = scmp.eq.s32.totalorder %s30, 0
      %p211 = por %p209, %p210
      %s212 = ssub.s32 %s31, %s50
      %s213 = ssub.s32 %s32, %s46
      %s214 = sor.u32 %s212, %s213
      %p215 = scmp.eq.s32.totalorder %s214, 0
      %s217 = sadd.s32 %s216, 1
      %s218 = scalar_select %p215, %s216, %s217
      %p221 = pneg %p215
      %p222 = scmp.eq.s32.totalorder %s24, 1
      %p223 = por %p221, %p222
      %p224 = scmp.ne.s32.totalorder %s216, %s219
      %p225 = scmp.eq.s32.totalorder %s24, 0
      %p226 = por %p224, %p225
      %p227 = scmp.ne.s32.totalorder %s216, %s219
      %p228 = scmp.eq.s32.totalorder %s29, 1
      %p229 = por %p227, %p228
      %p230 = scmp.ne.s32.totalorder %s219, %s220
      %p231 = scmp.eq.s32.totalorder %s29, 0
      %p232 = por %p230, %p231
      %p233 = scmp.ne.s32.totalorder %s219, %s220
      %p234 = scmp.eq.s32.totalorder %s30, 1
      %p235 = por %p233, %p234
      %p237 = scmp.ne.s32.totalorder %s220, %s236
      %p238 = scmp.eq.s32.totalorder %s30, 0
      %p239 = por %p237, %p238
      %p240 = scmp.le.s32.totalorder 1, %s24
      %p241 = scmp.lt.s32.totalorder %s24, 3
      %p242 = pnand %p240, %p241
      %p243 = pneg %p242
      // Predicated region
      $region9: #{tpu_custom_call.1} parent=5 // pred_check
        _
      $region10: #{tpu_custom_call.1} parent=5 // pred_check_branch
        %245 = sbr.rel (%p242) target = $region12
      $region11: #{tpu_custom_call.1} parent=5 // pred_region
        %s246 = ssub.s32 %s24, 1
        // Predicated region
        $region13: #{tpu_custom_call.1} parent=11 // pred_check
          %p247 = pneg %p120
        $region14: #{tpu_custom_call.1} parent=11 // pred_check_branch
          %249 = sbr.rel (%p247) target = $region16
        $region15: #{tpu_custom_call.1} parent=11 // pred_region
          %s251 = ssub.s32 1024, 1024
          %252 = vsyncadd [#allocation11], %s251
          %s253 = sshll.u32 [#allocation12], 4
          %s254 = int_to_ptr.vmem [resolvable:$true] %s253
          %259 = dma.hbm_to_vmem [thread:$0]  %s2, 1024, %s254, [#allocation11], 64, 64, 4
        $region16: #{tpu_custom_call.1} parent=11 // pred_fallthru
          _
        // Predicated region
        $region17: #{tpu_custom_call.1} parent=11 // pred_check
          %p260 = pneg %p141
        $region18: #{tpu_custom_call.1} parent=11 // pred_check_branch
          %262 = sbr.rel (%p260) target = $region20
        $region19: #{tpu_custom_call.1} parent=11 // pred_region
          _
        $region20: #{tpu_custom_call.1} parent=11 // pred_fallthru
          _
        // Predicated region
        $region21: #{tpu_custom_call.1} parent=11 // pred_check
          %p263 = pneg %p162
        $region22: #{tpu_custom_call.1} parent=11 // pred_check_branch
          %265 = sbr.rel (%p263) target = $region24
        $region23: #{tpu_custom_call.1} parent=11 // pred_region
          %s267 = ssub.s32 1024, 1024
          %268 = vsyncadd [#allocation14], %s267
          %s269 = sshll.u32 [#allocation13], 4
          %s270 = int_to_ptr.vmem [resolvable:$true] %s269
          %275 = dma.hbm_to_vmem [thread:$0]  %s4, 1024, %s270, [#allocation14], 64, 64, 4
        $region24: #{tpu_custom_call.1} parent=11 // pred_fallthru
          _
        // Predicated region
        $region25: #{tpu_custom_call.1} parent=11 // pred_check
          %p276 = pneg %p183
        $region26: #{tpu_custom_call.1} parent=11 // pred_check_branch
          %278 = sbr.rel (%p276) target = $region28
        $region27: #{tpu_custom_call.1} parent=11 // pred_region
          _
        $region28: #{tpu_custom_call.1} parent=11 // pred_fallthru
          _
        // Predicated region
        $region29: #{tpu_custom_call.1} parent=11 // pred_check
          %p279 = pneg %p204
        $region30: #{tpu_custom_call.1} parent=11 // pred_check_branch
          %281 = sbr.rel (%p279) target = $region32
        $region31: #{tpu_custom_call.1} parent=11 // pred_region
          _
        $region32: #{tpu_custom_call.1} parent=11 // pred_fallthru
          _
      $region12: #{tpu_custom_call.1} parent=5 // pred_fallthru
        _
      %p282 = scmp.lt.s32.totalorder %s24, 2
      // Predicated region
      $region33: #{tpu_custom_call.1} parent=5 // pred_check
        %p283 = pneg %p282
      $region34: #{tpu_custom_call.1} parent=5 // pred_check_branch
        %285 = sbr.rel (%p283) target = $region36
      $region35: #{tpu_custom_call.1} parent=5 // pred_region
        // Predicated region
        $region37: #{tpu_custom_call.1} parent=35 // pred_check
          %p286 = pneg %p65
        $region38: #{tpu_custom_call.1} parent=35 // pred_check_branch
          %288 = sbr.rel (%p286) target = $region40
        $region39: #{tpu_custom_call.1} parent=35 // pred_region
          %s289 = sand.u32 %s55, 1
          %s290 = scalar_lea.sflag [#allocation8], %s289
          %s291 = sand.u32 %s55, 1
          %s292 = smul.addr %s291, 64
          %s293 = scalar_lea.vmem [#allocation7], %s292
          %s294 = smul.u32 8, %s32
          %s296 = ssub.s32 1024, 1024
          %297 = vsyncadd %s290, %s296
          %s298 = smul.addr %s31, 8
          %s299 = sadd.s32 %s294, %s298
          %s300 = smul.addr %s299, 128
          %s301 = scalar_lea.hbm %s0, %s300
          %s302 = sshll.u32 %s293, 4
          %s303 = int_to_ptr.vmem [resolvable:$true] %s302
          %308 = dma.hbm_to_vmem [thread:$0]  %s301, 1024, %s303, %s290, 128, 128, 8
        $region40: #{tpu_custom_call.1} parent=35 // pred_fallthru
          _
        // Predicated region
        $region41: #{tpu_custom_call.1} parent=35 // pred_check
          %p309 = pneg %p93
        $region42: #{tpu_custom_call.1} parent=35 // pred_check_branch
          %311 = sbr.rel (%p309) target = $region44
        $region43: #{tpu_custom_call.1} parent=35 // pred_region
          %s312 = sand.u32 %s24, 1
          %s313 = scalar_lea.sflag [#allocation11], %s312
          %s314 = sand.u32 %s83, 1
          %s315 = smul.addr %s314, 64
          %s316 = scalar_lea.vmem [#allocation10], %s315
          %s317 = smul.u32 8, %s33
          %s319 = ssub.s32 1024, 1024
          %320 = vsyncadd %s313, %s319
          %s321 = smul.addr %s31, 8
          %s322 = sadd.s32 %s317, %s321
          %s323 = smul.addr %s322, 128
          %s324 = scalar_lea.hbm %s1, %s323
          %s325 = sshll.u32 %s316, 4
          %s326 = int_to_ptr.vmem [resolvable:$true] %s325
          %331 = dma.hbm_to_vmem [thread:$0]  %s324, 1024, %s326, %s313, 128, 128, 8
        $region44: #{tpu_custom_call.1} parent=35 // pred_fallthru
          _
      $region36: #{tpu_custom_call.1} parent=5 // pred_fallthru
        _
      %p332 = scmp.le.s32.totalorder 1, %s24
      %p333 = scmp.lt.s32.totalorder %s24, 3
      %p334 = pnand %p332, %p333
      %p335 = pneg %p334
      // Predicated region
      $region45: #{tpu_custom_call.1} parent=5 // pred_check
        _
      $region46: #{tpu_custom_call.1} parent=5 // pred_check_branch
        %337 = sbr.rel (%p334) target = $region48
      $region47: #{tpu_custom_call.1} parent=5 // pred_region
        %s338 = ssub.s32 %s24, 1
        %s339 = sand.u32 %s58, 1
        %s340 = scalar_lea.sflag [#allocation8], %s339
        %s341 = sand.u32 %s58, 1
        %s342 = smul.addr %s341, 64
        %s343 = scalar_lea.vmem [#allocation7], %s342
        // Predicated region
        $region49: #{tpu_custom_call.1} parent=47 // pred_check
          %p344 = pneg %p71
        $region50: #{tpu_custom_call.1} parent=47 // pred_check_branch
          %346 = sbr.rel (%p344) target = $region52
        $region51: #{tpu_custom_call.1} parent=47 // pred_region
          %347 = dma.done %s340, 1024
        $region52: #{tpu_custom_call.1} parent=47 // pred_fallthru
          _
        %s348 = sand.u32 %s29, 1
        %s349 = scalar_lea.sflag [#allocation11], %s348
        %s350 = sand.u32 %s86, 1
        %s351 = smul.addr %s350, 64
        %s352 = scalar_lea.vmem [#allocation10], %s351
        // Predicated region
        $region53: #{tpu_custom_call.1} parent=47 // pred_check
          %p353 = pneg %p99
        $region54: #{tpu_custom_call.1} parent=47 // pred_check_branch
          %355 = sbr.rel (%p353) target = $region56
        $region55: #{tpu_custom_call.1} parent=47 // pred_region
          %356 = dma.done %s349, 1024
        $region56: #{tpu_custom_call.1} parent=47 // pred_fallthru
          _
        // Predicated region
        $region57: #{tpu_custom_call.1} parent=47 // pred_check
          %p357 = pneg %p120
        $region58: #{tpu_custom_call.1} parent=47 // pred_check_branch
          %359 = sbr.rel (%p357) target = $region60
        $region59: #{tpu_custom_call.1} parent=47 // pred_region
          %360 = dma.done [#allocation11], 1024
        $region60: #{tpu_custom_call.1} parent=47 // pred_fallthru
          _
        // Predicated region
        $region61: #{tpu_custom_call.1} parent=47 // pred_check
          %p361 = pneg %p162
        $region62: #{tpu_custom_call.1} parent=47 // pred_check_branch
          %363 = sbr.rel (%p361) target = $region64
        $region63: #{tpu_custom_call.1} parent=47 // pred_region
          %364 = dma.done [#allocation14], 1024
        $region64: #{tpu_custom_call.1} parent=47 // pred_fallthru
          _
        %s365 = sand.u32 %s58, 1
        %s366 = scalar_lea.sflag [#allocation8], %s365
        %s367 = sand.u32 %s58, 1
        %s368 = smul.addr %s367, 64
        %s369 = scalar_lea.vmem [#allocation7], %s368
        %p370 = pneg %p71
        %p371 = pneg %p68
        %s372 = sand.u32 %s29, 1
        %s373 = scalar_lea.sflag [#allocation11], %s372
        %s374 = sand.u32 %s86, 1
        %s375 = smul.addr %s374, 64
        %s376 = scalar_lea.vmem [#allocation10], %s375
        %p377 = pneg %p99
        %p378 = pneg %p96
        %p379 = pneg %p120
        %p380 = pneg %p117
        %p381 = pneg %p141
        %p382 = pneg %p138
        %p383 = pneg %p162
        %p384 = pneg %p159
        %p385 = pneg %p183
        %p386 = pneg %p180
        %p387 = pneg %p204
        %p388 = pneg %p201
        %p389 = pneg %p232
        %p390 = pneg %p229
        %s391 = sand.u32 %s219, 1
        %s392 = scalar_lea.sflag [#allocation9], %s391
        %s393 = sand.u32 %s219, 1
        %s394 = smul.addr %s393, 64
        %s395 = scalar_lea.vmem [#allocation15], %s394
        %s396 = smul.u32 8, %s35
        %s397 = smul.u32 8, %s36
        %s398 = smul.u32 8, %s35
        %p400 = scmp.eq.s32.totalorder %s36, 0
        // Predicated region
        $region65: #{tpu_custom_call.1} parent=47 // pred_check
          %p401 = pneg %p400
        $region66: #{tpu_custom_call.1} parent=47 // pred_check_branch
          %403 = sbr.rel (%p401) target = $region68
        $region67: #{tpu_custom_call.1} parent=47 // pred_region
          %v404 = vld [vmem:[%s343] sm:$0xff]
          %v405 = vld [vmem:[%s343 + $0x8] sm:$0xff]
          %v406 = vld [vmem:[%s343 + $0x10] sm:$0xff]
          %v407 = vld [vmem:[%s343 + $0x18] sm:$0xff]
          %v408 = vld [vmem:[%s343 + $0x20] sm:$0xff]
          %v409 = vld [vmem:[%s343 + $0x28] sm:$0xff]
          %v410 = vld [vmem:[%s343 + $0x30] sm:$0xff]
          %v411 = vld [vmem:[%s343 + $0x38] sm:$0xff]
          %v412 = vpack.c.bf16 %v405, %v404
          %v413 = vpack.c.bf16 %v407, %v406
          %v414 = vpack.c.bf16 %v409, %v408
          %v415 = vpack.c.bf16 %v411, %v410
          %v416 = vld [vmem:[#allocation12] sm:$0xf]
          %v417 = vld [vmem:[#allocation12 + $0x4] sm:$0xf]
          %v418 = vld [vmem:[#allocation12 + $0x8] sm:$0xf]
          %v419 = vld [vmem:[#allocation12 + $0xc] sm:$0xf]
          %v420 = vld [vmem:[#allocation12 + $0x10] sm:$0xf]
          %v421 = vld [vmem:[#allocation12 + $0x14] sm:$0xf]
          %v422 = vld [vmem:[#allocation12 + $0x18] sm:$0xf]
          %v423 = vld [vmem:[#allocation12 + $0x1c] sm:$0xf]
          %v424 = vld [vmem:[#allocation12 + $0x20] sm:$0xf]
          %v425 = vld [vmem:[#allocation12 + $0x24] sm:$0xf]
          %v426 = vld [vmem:[#allocation12 + $0x28] sm:$0xf]
          %v427 = vld [vmem:[#allocation12 + $0x2c] sm:$0xf]
          %v428 = vld [vmem:[#allocation12 + $0x30] sm:$0xf]
          %v429 = vld [vmem:[#allocation12 + $0x34] sm:$0xf]
          %v430 = vld [vmem:[#allocation12 + $0x38] sm:$0xf]
          %v431 = vld [vmem:[#allocation12 + $0x3c] sm:$0xf]
          %v432 = vld [vmem:[%s3] sm:$0x1]
          %v434 = vlaneseq
          %v435 = vshrl.u32 %v434, 7
          %v436 = vsub.s32 0, %v435
          %v437 = vrot.slane %v432, %v436
          %v455 = vunpack.c.l.b16 %v416
          %v456 = vunpack.c.l.b16 %v417
          %v457 = vunpack.c.l.b16 %v418
          %v458 = vunpack.c.l.b16 %v419
          %v459 = vunpack.c.l.b16 %v420
          %v460 = vunpack.c.l.b16 %v421
          %v461 = vunpack.c.l.b16 %v422
          %v462 = vunpack.c.l.b16 %v423
          %v463 = vunpack.c.l.b16 %v424
          %v464 = vunpack.c.l.b16 %v425
          %v465 = vunpack.c.l.b16 %v426
          %v466 = vunpack.c.l.b16 %v427
          %v467 = vunpack.c.l.b16 %v428
          %v468 = vunpack.c.l.b16 %v429
          %v469 = vunpack.c.l.b16 %v430
          %v470 = vunpack.c.l.b16 %v431
          %v471 = vpack.c.b16 %v456, %v455
          %v472 = vpack.c.b16 %v458, %v457
          %v473 = vpack.c.b16 %v460, %v459
          %v474 = vpack.c.b16 %v462, %v461
          %v475 = vpack.c.b16 %v464, %v463
          %v476 = vpack.c.b16 %v466, %v465
          %v477 = vpack.c.b16 %v468, %v467
          %v478 = vpack.c.b16 %v470, %v469
          %487 = vmatprep.subr.bf16.mxu0 0
          %488 = vmatpush1.bf16.msra.mxu0 %v478
          %489 = vmatprep.subr.bf16.mxu0 0
          %490 = vmatpush1.bf16.msra.mxu0 %v477
          %491 = vmatprep.subr.bf16.mxu0 0
          %492 = vmatpush1.bf16.msra.mxu0 %v476
          %493 = vmatprep.subr.bf16.mxu0 0
          %494 = vmatpush1.bf16.msra.mxu0 %v475
          %495 = vmatprep.subr.bf16.mxu0 0
          %496 = vmatpush1.bf16.msra.mxu0 %v474
          %497 = vmatprep.subr.bf16.mxu0 0
          %498 = vmatpush1.bf16.msra.mxu0 %v473
          %499 = vmatprep.subr.bf16.mxu0 0
          %500 = vmatpush1.bf16.msra.mxu0 %v472
          %501 = vmatprep.subr.bf16.mxu0 0
          %502 = vmatpush1.bf16.msra.mxu0 %v471
          %503 = vmatprep.subr.bf16.mxu0 0
          %504 = vmatpush2.bf16.msra.mxu0 0
          %505 = vmatprep.subr.bf16.mxu0 0
          %506 = vmatpush2.bf16.msra.mxu0 0
          %507 = vmatprep.subr.bf16.mxu0 0
          %508 = vmatpush2.bf16.msra.mxu0 0
          %509 = vmatprep.subr.bf16.mxu0 0
          %510 = vmatpush2.bf16.msra.mxu0 0
          %511 = vmatprep.subr.bf16.mxu0 0
          %512 = vmatpush2.bf16.msra.mxu0 0
          %513 = vmatprep.subr.bf16.mxu0 0
          %514 = vmatpush2.bf16.msra.mxu0 0
          %515 = vmatprep.subr.bf16.mxu0 0
          %516 = vmatpush2.bf16.msra.mxu0 0
          %517 = vmatprep.subr.bf16.mxu0 0
          %518 = vmatpush2.bf16.msra.mxu0 0
          %519 = vmatprep.mubr.bf16.mxu0 0
          %520 = vmatmul.mubr.bf16.gmra.mxu0 %v412
          %v521 = vpop.f32.mrf.mxu0
          %v522 = vadd.f32 %v437, %v521
          %v523 = vpop.f32.mrf.mxu0
          %v524 = vpop.f32.mrf.mxu0
          %v525 = vadd.f32 %v437, %v524
          %v526 = vpop.f32.mrf.mxu0
          %527 = vmatprep.mubr.bf16.mxu0 0
          %528 = vmatmul.mubr.bf16.gmra.mxu0 %v413
          %v529 = vpop.f32.mrf.mxu0
          %v530 = vadd.f32 %v437, %v529
          %v531 = vpop.f32.mrf.mxu0
          %v532 = vpop.f32.mrf.mxu0
          %v533 = vadd.f32 %v437, %v532
          %v534 = vpop.f32.mrf.mxu0
          %535 = vmatprep.mubr.bf16.mxu0 0
          %536 = vmatmul.mubr.bf16.gmra.mxu0 %v414
          %v537 = vpop.f32.mrf.mxu0
          %v538 = vadd.f32 %v437, %v537
          %v539 = vpop.f32.mrf.mxu0
          %v540 = vpop.f32.mrf.mxu0
          %v541 = vadd.f32 %v437, %v540
          %v542 = vpop.f32.mrf.mxu0
          %543 = vmatprep.mubr.bf16.mxu0 0
          %544 = vmatmul.mubr.bf16.gmra.mxu0 %v415
          %v545 = vpop.f32.mrf.mxu0
          %v546 = vadd.f32 %v437, %v545
          %v547 = vpop.f32.mrf.mxu0
          %v548 = vpop.f32.mrf.mxu0
          %v549 = vadd.f32 %v437, %v548
          %v550 = vpop.f32.mrf.mxu0
          %551 = vdwg.mxu0
          %v552 = vpack.c.bf16 %v525, %v522
          %v553 = vpack.c.bf16 %v533, %v530
          %v554 = vpack.c.bf16 %v541, %v538
          %v555 = vpack.c.bf16 %v549, %v546
          %v560 = vunpack.c.l.b16 %v552
          %v561 = vunpack.c.h.b16 %v552
          %v562 = vunpack.c.l.b16 %v553
          %v563 = vunpack.c.h.b16 %v553
          %v564 = vunpack.c.l.b16 %v554
          %v565 = vunpack.c.h.b16 %v554
          %v566 = vunpack.c.l.b16 %v555
          %v567 = vunpack.c.h.b16 %v555
          %v568 = vpack.c.b16 %v560, %v560
          %v569 = vpack.c.b16 %v561, %v561
          %v570 = vpack.c.b16 %v562, %v562
          %v571 = vpack.c.b16 %v563, %v563
          %v572 = vpack.c.b16 %v564, %v564
          %v573 = vpack.c.b16 %v565, %v565
          %v574 = vpack.c.b16 %v566, %v566
          %v575 = vpack.c.b16 %v567, %v567
          %584 = vst [vmem:[#allocation2] sm:$0xf] %v568
          %585 = vst [vmem:[#allocation2 + $0x4] sm:$0xf] %v569
          %586 = vst [vmem:[#allocation2 + $0x8] sm:$0xf] %v570
          %587 = vst [vmem:[#allocation2 + $0xc] sm:$0xf] %v571
          %588 = vst [vmem:[#allocation2 + $0x10] sm:$0xf] %v572
          %589 = vst [vmem:[#allocation2 + $0x14] sm:$0xf] %v573
          %590 = vst [vmem:[#allocation2 + $0x18] sm:$0xf] %v574
          %591 = vst [vmem:[#allocation2 + $0x1c] sm:$0xf] %v575
          %vm592 = vcmask 7168
          %593 = vst.msk [vmem:[#allocation3] sm:$0xff] %vm592, -inf
          %594 = vst.msk [vmem:[#allocation3 + $0x8] sm:$0xff] %vm592, -inf
          %595 = vst.msk [vmem:[#allocation3 + $0x10] sm:$0xff] %vm592, -inf
          %596 = vst.msk [vmem:[#allocation3 + $0x18] sm:$0xff] %vm592, -inf
          %597 = vst.msk [vmem:[#allocation3 + $0x20] sm:$0xff] %vm592, -inf
          %598 = vst.msk [vmem:[#allocation3 + $0x28] sm:$0xff] %vm592, -inf
          %599 = vst.msk [vmem:[#allocation3 + $0x30] sm:$0xff] %vm592, -inf
          %600 = vst.msk [vmem:[#allocation3 + $0x38] sm:$0xff] %vm592, -inf
          %601 = vst.msk [vmem:[#allocation4] sm:$0xff] %vm592, 0.0
          %602 = vst.msk [vmem:[#allocation4 + $0x8] sm:$0xff] %vm592, 0.0
          %603 = vst.msk [vmem:[#allocation4 + $0x10] sm:$0xff] %vm592, 0.0
          %604 = vst.msk [vmem:[#allocation4 + $0x18] sm:$0xff] %vm592, 0.0
          %605 = vst.msk [vmem:[#allocation4 + $0x20] sm:$0xff] %vm592, 0.0
          %606 = vst.msk [vmem:[#allocation4 + $0x28] sm:$0xff] %vm592, 0.0
          %607 = vst.msk [vmem:[#allocation4 + $0x30] sm:$0xff] %vm592, 0.0
          %608 = vst.msk [vmem:[#allocation4 + $0x38] sm:$0xff] %vm592, 0.0
          %609 = vst [vmem:[#allocation5] sm:$0xff] 0.0
          %610 = vst [vmem:[#allocation5 + $0x8] sm:$0xff] 0.0
          %611 = vst [vmem:[#allocation5 + $0x10] sm:$0xff] 0.0
          %612 = vst [vmem:[#allocation5 + $0x18] sm:$0xff] 0.0
          %613 = vst [vmem:[#allocation5 + $0x20] sm:$0xff] 0.0
          %614 = vst [vmem:[#allocation5 + $0x28] sm:$0xff] 0.0
          %615 = vst [vmem:[#allocation5 + $0x30] sm:$0xff] 0.0
          %616 = vst [vmem:[#allocation5 + $0x38] sm:$0xff] 0.0
        $region68: #{tpu_custom_call.1} parent=47 // pred_fallthru
          _
        %v617 = vld [vmem:[%s352] sm:$0xff]
        %v618 = vld [vmem:[%s352 + $0x8] sm:$0xff]
        %v619 = vld [vmem:[%s352 + $0x10] sm:$0xff]
        %v620 = vld [vmem:[%s352 + $0x18] sm:$0xff]
        %v621 = vld [vmem:[%s352 + $0x20] sm:$0xff]
        %v622 = vld [vmem:[%s352 + $0x28] sm:$0xff]
        %v623 = vld [vmem:[%s352 + $0x30] sm:$0xff]
        %v624 = vld [vmem:[%s352 + $0x38] sm:$0xff]
        %v625 = vpack.c.bf16 %v618, %v617
        %v626 = vpack.c.bf16 %v620, %v619
        %v627 = vpack.c.bf16 %v622, %v621
        %v628 = vpack.c.bf16 %v624, %v623
        %v629 = vld [vmem:[#allocation2] sm:$0xf]
        %v630 = vld [vmem:[#allocation2 + $0x4] sm:$0xf]
        %v631 = vld [vmem:[#allocation2 + $0x8] sm:$0xf]
        %v632 = vld [vmem:[#allocation2 + $0xc] sm:$0xf]
        %v633 = vld [vmem:[#allocation2 + $0x10] sm:$0xf]
        %v634 = vld [vmem:[#allocation2 + $0x14] sm:$0xf]
        %v635 = vld [vmem:[#allocation2 + $0x18] sm:$0xf]
        %v636 = vld [vmem:[#allocation2 + $0x1c] sm:$0xf]
        %v645 = vunpack.c.l.b16 %v629
        %v646 = vunpack.c.l.b16 %v630
        %v647 = vunpack.c.l.b16 %v631
        %v648 = vunpack.c.l.b16 %v632
        %v649 = vunpack.c.l.b16 %v633
        %v650 = vunpack.c.l.b16 %v634
        %v651 = vunpack.c.l.b16 %v635
        %v652 = vunpack.c.l.b16 %v636
        %v653 = vpack.c.b16 %v646, %v645
        %v654 = vpack.c.b16 %v648, %v647
        %v655 = vpack.c.b16 %v650, %v649
        %v656 = vpack.c.b16 %v652, %v651
        %661 = vmatprep.subr.bf16.mxu0 0
        %662 = vmatpush1.bf16.xpose.msra.mxu0 0
        %663 = vmatprep.subr.bf16.mxu0 0
        %664 = vmatpush1.bf16.xpose.msra.mxu0 0
        %665 = vmatprep.subr.bf16.mxu0 0
        %666 = vmatpush1.bf16.xpose.msra.mxu0 0
        %667 = vmatprep.subr.bf16.mxu0 0
        %668 = vmatpush1.bf16.xpose.msra.mxu0 0
        %669 = vmatprep.subr.bf16.mxu0 0
        %670 = vmatpush1.bf16.xpose.msra.mxu0 %v628
        %671 = vmatprep.subr.bf16.mxu0 0
        %672 = vmatpush1.bf16.xpose.msra.mxu0 %v627
        %673 = vmatprep.subr.bf16.mxu0 0
        %674 = vmatpush1.bf16.xpose.msra.mxu0 %v626
        %675 = vmatprep.subr.bf16.mxu0 0
        %676 = vmatpush1.bf16.xpose.msra.mxu0 %v625
        %677 = vmatprep.subr.bf16.mxu0 0
        %678 = vmatpush2.bf16.xpose.msra.mxu0 0
        %679 = vmatprep.subr.bf16.mxu0 0
        %680 = vmatpush2.bf16.xpose.msra.mxu0 0
        %681 = vmatprep.subr.bf16.mxu0 0
        %682 = vmatpush2.bf16.xpose.msra.mxu0 0
        %683 = vmatprep.subr.bf16.mxu0 0
        %684 = vmatpush2.bf16.xpose.msra.mxu0 0
        %685 = vmatprep.subr.bf16.mxu0 0
        %686 = vmatpush2.bf16.xpose.msra.mxu0 0
        %687 = vmatprep.subr.bf16.mxu0 0
        %688 = vmatpush2.bf16.xpose.msra.mxu0 0
        %689 = vmatprep.subr.bf16.mxu0 0
        %690 = vmatpush2.bf16.xpose.msra.mxu0 0
        %691 = vmatprep.subr.bf16.mxu0 0
        %692 = vmatpush2.bf16.xpose.msra.mxu0 0
        %693 = vmatprep.mubr.bf16.mxu0 0
        %694 = vmatmul.mubr.bf16.gmra.mxu0 %v653
        %v695 = vpop.f32.mrf.mxu0
        %v696 = vadd.f32 0.0, %v695
        %v697 = vpop.f32.mrf.mxu0
        %v698 = vpop.f32.mrf.mxu0
        %v699 = vadd.f32 0.0, %v698
        %v700 = vpop.f32.mrf.mxu0
        %701 = vmatprep.mubr.bf16.mxu0 0
        %702 = vmatmul.mubr.bf16.gmra.mxu0 %v654
        %v703 = vpop.f32.mrf.mxu0
        %v704 = vadd.f32 0.0, %v703
        %v705 = vpop.f32.mrf.mxu0
        %v706 = vpop.f32.mrf.mxu0
        %v707 = vadd.f32 0.0, %v706
        %v708 = vpop.f32.mrf.mxu0
        %709 = vmatprep.mubr.bf16.mxu0 0
        %710 = vmatmul.mubr.bf16.gmra.mxu0 %v655
        %v711 = vpop.f32.mrf.mxu0
        %v712 = vadd.f32 0.0, %v711
        %v713 = vpop.f32.mrf.mxu0
        %v714 = vpop.f32.mrf.mxu0
        %v715 = vadd.f32 0.0, %v714
        %v716 = vpop.f32.mrf.mxu0
        %717 = vmatprep.mubr.bf16.mxu0 0
        %718 = vmatmul.mubr.bf16.gmra.mxu0 %v656
        %v719 = vpop.f32.mrf.mxu0
        %v720 = vadd.f32 0.0, %v719
        %v721 = vpop.f32.mrf.mxu0
        %v722 = vpop.f32.mrf.mxu0
        %v723 = vadd.f32 0.0, %v722
        %v724 = vpop.f32.mrf.mxu0
        %725 = vdwg.mxu0
        %v726 = vld [vmem:[#allocation3] sm:$0xff]
        %v727 = vld [vmem:[#allocation3 + $0x8] sm:$0xff]
        %v728 = vld [vmem:[#allocation3 + $0x10] sm:$0xff]
        %v729 = vld [vmem:[#allocation3 + $0x18] sm:$0xff]
        %v730 = vld [vmem:[#allocation3 + $0x20] sm:$0xff]
        %v731 = vld [vmem:[#allocation3 + $0x28] sm:$0xff]
        %v732 = vld [vmem:[#allocation3 + $0x30] sm:$0xff]
        %v733 = vld [vmem:[#allocation3 + $0x38] sm:$0xff]
        %vm734 = vcmask 523264
        %v735 = vsel %vm734, %v696, -inf
        %736 = vmax.xlane.f32.xlu0 %v735
        %v737 = vpop.xlane.xlu0 %736
        %v738 = vsel %vm734, %v699, -inf
        %739 = vmax.xlane.f32.xlu0 %v738
        %v740 = vpop.xlane.xlu0 %739
        %v741 = vsel %vm734, %v704, -inf
        %742 = vmax.xlane.f32.xlu0 %v741
        %v743 = vpop.xlane.xlu0 %742
        %v744 = vsel %vm734, %v707, -inf
        %745 = vmax.xlane.f32.xlu0 %v744
        %v746 = vpop.xlane.xlu0 %745
        %v747 = vsel %vm734, %v712, -inf
        %748 = vmax.xlane.f32.xlu0 %v747
        %v749 = vpop.xlane.xlu0 %748
        %v750 = vsel %vm734, %v715, -inf
        %751 = vmax.xlane.f32.xlu0 %v750
        %v752 = vpop.xlane.xlu0 %751
        %v753 = vsel %vm734, %v720, -inf
        %754 = vmax.xlane.f32.xlu0 %v753
        %v755 = vpop.xlane.xlu0 %754
        %v756 = vsel %vm734, %v723, -inf
        %757 = vmax.xlane.f32.xlu0 %v756
        %v758 = vpop.xlane.xlu0 %757
        %v759 = vmax.f32 %v726, %v737
        %v760 = vmax.f32 %v727, %v740
        %v761 = vmax.f32 %v728, %v743
        %v762 = vmax.f32 %v729, %v746
        %v763 = vmax.f32 %v730, %v749
        %v764 = vmax.f32 %v731, %v752
        %v765 = vmax.f32 %v732, %v755
        %v766 = vmax.f32 %v733, %v758
        %v767 = vsub.f32 %v726, %v759
        %v768 = vsub.f32 %v727, %v760
        %v769 = vsub.f32 %v728, %v761
        %v770 = vsub.f32 %v729, %v762
        %v771 = vsub.f32 %v730, %v763
        %v772 = vsub.f32 %v731, %v764
        %v773 = vsub.f32 %v732, %v765
        %v774 = vsub.f32 %v733, %v766
        %v775 = vmul.f32 %v767, 1.442695
        %v776 = vpow.pop %v775
        %v777 = vmul.f32 %v768, 1.442695
        %v778 = vpow.pop %v777
        %v779 = vmul.f32 %v769, 1.442695
        %v780 = vpow.pop %v779
        %v781 = vmul.f32 %v770, 1.442695
        %v782 = vpow.pop %v781
        %v783 = vmul.f32 %v771, 1.442695
        %v784 = vpow.pop %v783
        %v785 = vmul.f32 %v772, 1.442695
        %v786 = vpow.pop %v785
        %v787 = vmul.f32 %v773, 1.442695
        %v788 = vpow.pop %v787
        %v789 = vmul.f32 %v774, 1.442695
        %v790 = vpow.pop %v789
        %792 = vset.pattern.permute.xlu0 0
        %793 = vperm.xlu0 %792, %v759
        %v794 = vpop.permute.xlu0 %793
        %797 = vset.pattern.permute.xlu0 0
        %798 = vperm.xlu0 %797, %v760
        %v799 = vpop.permute.xlu0 %798
        %802 = vset.pattern.permute.xlu0 0
        %803 = vperm.xlu0 %802, %v761
        %v804 = vpop.permute.xlu0 %803
        %807 = vset.pattern.permute.xlu0 0
        %808 = vperm.xlu0 %807, %v762
        %v809 = vpop.permute.xlu0 %808
        %812 = vset.pattern.permute.xlu0 0
        %813 = vperm.xlu0 %812, %v763
        %v814 = vpop.permute.xlu0 %813
        %817 = vset.pattern.permute.xlu0 0
        %818 = vperm.xlu0 %817, %v764
        %v819 = vpop.permute.xlu0 %818
        %822 = vset.pattern.permute.xlu0 0
        %823 = vperm.xlu0 %822, %v765
        %v824 = vpop.permute.xlu0 %823
        %827 = vset.pattern.permute.xlu0 0
        %828 = vperm.xlu0 %827, %v766
        %v829 = vpop.permute.xlu0 %828
        %v831 = vsub.f32 %v696, %v794
        %v832 = vsub.f32 %v699, %v799
        %v833 = vsub.f32 %v704, %v804
        %v834 = vsub.f32 %v707, %v809
        %v835 = vsub.f32 %v712, %v814
        %v836 = vsub.f32 %v715, %v819
        %v837 = vsub.f32 %v720, %v824
        %v838 = vsub.f32 %v723, %v829
        %v839 = vmul.f32 %v831, 1.442695
        %v840 = vpow.pop %v839
        %v841 = vmul.f32 %v832, 1.442695
        %v842 = vpow.pop %v841
        %v843 = vmul.f32 %v833, 1.442695
        %v844 = vpow.pop %v843
        %v845 = vmul.f32 %v834, 1.442695
        %v846 = vpow.pop %v845
        %v847 = vmul.f32 %v835, 1.442695
        %v848 = vpow.pop %v847
        %v849 = vmul.f32 %v836, 1.442695
        %v850 = vpow.pop %v849
        %v851 = vmul.f32 %v837, 1.442695
        %v852 = vpow.pop %v851
        %v853 = vmul.f32 %v838, 1.442695
        %v854 = vpow.pop %v853
        %v855 = vld [vmem:[#allocation4] sm:$0xff]
        %v856 = vld [vmem:[#allocation4 + $0x8] sm:$0xff]
        %v857 = vld [vmem:[#allocation4 + $0x10] sm:$0xff]
        %v858 = vld [vmem:[#allocation4 + $0x18] sm:$0xff]
        %v859 = vld [vmem:[#allocation4 + $0x20] sm:$0xff]
        %v860 = vld [vmem:[#allocation4 + $0x28] sm:$0xff]
        %v861 = vld [vmem:[#allocation4 + $0x30] sm:$0xff]
        %v862 = vld [vmem:[#allocation4 + $0x38] sm:$0xff]
        %v863 = vmul.f32 %v776, %v855
        %v864 = vmul.f32 %v778, %v856
        %v865 = vmul.f32 %v780, %v857
        %v866 = vmul.f32 %v782, %v858
        %v867 = vmul.f32 %v784, %v859
        %v868 = vmul.f32 %v786, %v860
        %v869 = vmul.f32 %v788, %v861
        %v870 = vmul.f32 %v790, %v862
        %v871 = vsel %vm734, %v840, 0.0
        %872 = vadd.xlane.f32.xlu0 %v871
        %v873 = vpop.xlane.xlu0 %872
        %v874 = vsel %vm734, %v842, 0.0
        %875 = vadd.xlane.f32.xlu0 %v874
        %v876 = vpop.xlane.xlu0 %875
        %v877 = vsel %vm734, %v844, 0.0
        %878 = vadd.xlane.f32.xlu0 %v877
        %v879 = vpop.xlane.xlu0 %878
        %v880 = vsel %vm734, %v846, 0.0
        %881 = vadd.xlane.f32.xlu0 %v880
        %v882 = vpop.xlane.xlu0 %881
        %v883 = vsel %vm734, %v848, 0.0
        %884 = vadd.xlane.f32.xlu0 %v883
        %v885 = vpop.xlane.xlu0 %884
        %v886 = vsel %vm734, %v850, 0.0
        %887 = vadd.xlane.f32.xlu0 %v886
        %v888 = vpop.xlane.xlu0 %887
        %v889 = vsel %vm734, %v852, 0.0
        %890 = vadd.xlane.f32.xlu0 %v889
        %v891 = vpop.xlane.xlu0 %890
        %v892 = vsel %vm734, %v854, 0.0
        %893 = vadd.xlane.f32.xlu0 %v892
        %v894 = vpop.xlane.xlu0 %893
        %v895 = vadd.f32 %v863, %v873
        %v896 = vadd.f32 %v864, %v876
        %v897 = vadd.f32 %v865, %v879
        %v898 = vadd.f32 %v866, %v882
        %v899 = vadd.f32 %v867, %v885
        %v900 = vadd.f32 %v868, %v888
        %v901 = vadd.f32 %v869, %v891
        %v902 = vadd.f32 %v870, %v894
        %vm903 = vcmask 7168
        %904 = vst.msk [vmem:[#allocation4] sm:$0xff] %vm903, %v895
        %905 = vst.msk [vmem:[#allocation4 + $0x8] sm:$0xff] %vm903, %v896
        %906 = vst.msk [vmem:[#allocation4 + $0x10] sm:$0xff] %vm903, %v897
        %907 = vst.msk [vmem:[#allocation4 + $0x18] sm:$0xff] %vm903, %v898
        %908 = vst.msk [vmem:[#allocation4 + $0x20] sm:$0xff] %vm903, %v899
        %909 = vst.msk [vmem:[#allocation4 + $0x28] sm:$0xff] %vm903, %v900
        %910 = vst.msk [vmem:[#allocation4 + $0x30] sm:$0xff] %vm903, %v901
        %911 = vst.msk [vmem:[#allocation4 + $0x38] sm:$0xff] %vm903, %v902
        %v912 = vld [vmem:[#allocation5] sm:$0xff]
        %v913 = vld [vmem:[#allocation5 + $0x8] sm:$0xff]
        %v914 = vld [vmem:[#allocation5 + $0x10] sm:$0xff]
        %v915 = vld [vmem:[#allocation5 + $0x18] sm:$0xff]
        %v916 = vld [vmem:[#allocation5 + $0x20] sm:$0xff]
        %v917 = vld [vmem:[#allocation5 + $0x28] sm:$0xff]
        %v918 = vld [vmem:[#allocation5 + $0x30] sm:$0xff]
        %v919 = vld [vmem:[#allocation5 + $0x38] sm:$0xff]
        %921 = vset.pattern.permute.xlu0 0
        %922 = vperm.xlu0 %921, %v776
        %v923 = vpop.permute.xlu0 %922
        %926 = vset.pattern.permute.xlu0 0
        %927 = vperm.xlu0 %926, %v778
        %v928 = vpop.permute.xlu0 %927
        %931 = vset.pattern.permute.xlu0 0
        %932 = vperm.xlu0 %931, %v780
        %v933 = vpop.permute.xlu0 %932
        %936 = vset.pattern.permute.xlu0 0
        %937 = vperm.xlu0 %936, %v782
        %v938 = vpop.permute.xlu0 %937
        %941 = vset.pattern.permute.xlu0 0
        %942 = vperm.xlu0 %941, %v784
        %v943 = vpop.permute.xlu0 %942
        %946 = vset.pattern.permute.xlu0 0
        %947 = vperm.xlu0 %946, %v786
        %v948 = vpop.permute.xlu0 %947
        %951 = vset.pattern.permute.xlu0 0
        %952 = vperm.xlu0 %951, %v788
        %v953 = vpop.permute.xlu0 %952
        %956 = vset.pattern.permute.xlu0 0
        %957 = vperm.xlu0 %956, %v790
        %v958 = vpop.permute.xlu0 %957
        %v960 = vmul.f32 %v923, %v912
        %v961 = vmul.f32 %v928, %v913
        %v962 = vmul.f32 %v933, %v914
        %v963 = vmul.f32 %v938, %v915
        %v964 = vmul.f32 %v943, %v916
        %v965 = vmul.f32 %v948, %v917
        %v966 = vmul.f32 %v953, %v918
        %v967 = vmul.f32 %v958, %v919
        %v968 = vpack.c.bf16 %v842, %v840
        %v969 = vpack.c.bf16 %v846, %v844
        %v970 = vpack.c.bf16 %v850, %v848
        %v971 = vpack.c.bf16 %v854, %v852
        %v973 = vsel %vm734, %v968, 0
        %v976 = vsel %vm734, %v969, 0
        %v979 = vsel %vm734, %v970, 0
        %v982 = vsel %vm734, %v971, 0
        %984 = vmatprep.subr.bf16.mxu0 0
        %985 = vmatpush1.bf16.msra.mxu0 0
        %986 = vmatprep.subr.bf16.mxu0 0
        %987 = vmatpush1.bf16.msra.mxu0 0
        %988 = vmatprep.subr.bf16.mxu0 0
        %989 = vmatpush1.bf16.msra.mxu0 0
        %990 = vmatprep.subr.bf16.mxu0 0
        %991 = vmatpush1.bf16.msra.mxu0 0
        %992 = vmatprep.subr.bf16.mxu0 0
        %993 = vmatpush1.bf16.msra.mxu0 %v628
        %994 = vmatprep.subr.bf16.mxu0 0
        %995 = vmatpush1.bf16.msra.mxu0 %v627
        %996 = vmatprep.subr.bf16.mxu0 0
        %997 = vmatpush1.bf16.msra.mxu0 %v626
        %998 = vmatprep.subr.bf16.mxu0 0
        %999 = vmatpush1.bf16.msra.mxu0 %v625
        %1000 = vmatprep.subr.bf16.mxu0 0
        %1001 = vmatpush2.bf16.msra.mxu0 0
        %1002 = vmatprep.subr.bf16.mxu0 0
        %1003 = vmatpush2.bf16.msra.mxu0 0
        %1004 = vmatprep.subr.bf16.mxu0 0
        %1005 = vmatpush2.bf16.msra.mxu0 0
        %1006 = vmatprep.subr.bf16.mxu0 0
        %1007 = vmatpush2.bf16.msra.mxu0 0
        %1008 = vmatprep.subr.bf16.mxu0 0
        %1009 = vmatpush2.bf16.msra.mxu0 0
        %1010 = vmatprep.subr.bf16.mxu0 0
        %1011 = vmatpush2.bf16.msra.mxu0 0
        %1012 = vmatprep.subr.bf16.mxu0 0
        %1013 = vmatpush2.bf16.msra.mxu0 0
        %1014 = vmatprep.subr.bf16.mxu0 0
        %1015 = vmatpush2.bf16.msra.mxu0 0
        %1016 = vmatprep.mubr.bf16.mxu0 0
        %1017 = vmatmul.mubr.bf16.gmra.mxu0 %v973
        %v1018 = vpop.f32.mrf.mxu0
        %v1019 = vadd.f32 0.0, %v1018
        %v1020 = vpop.f32.mrf.mxu0
        %v1021 = vpop.f32.mrf.mxu0
        %v1022 = vadd.f32 0.0, %v1021
        %v1023 = vpop.f32.mrf.mxu0
        %1024 = vmatprep.mubr.bf16.mxu0 0
        %1025 = vmatmul.mubr.bf16.gmra.mxu0 %v976
        %v1026 = vpop.f32.mrf.mxu0
        %v1027 = vadd.f32 0.0, %v1026
        %v1028 = vpop.f32.mrf.mxu0
        %v1029 = vpop.f32.mrf.mxu0
        %v1030 = vadd.f32 0.0, %v1029
        %v1031 = vpop.f32.mrf.mxu0
        %1032 = vmatprep.mubr.bf16.mxu0 0
        %1033 = vmatmul.mubr.bf16.gmra.mxu0 %v979
        %v1034 = vpop.f32.mrf.mxu0
        %v1035 = vadd.f32 0.0, %v1034
        %v1036 = vpop.f32.mrf.mxu0
        %v1037 = vpop.f32.mrf.mxu0
        %v1038 = vadd.f32 0.0, %v1037
        %v1039 = vpop.f32.mrf.mxu0
        %1040 = vmatprep.mubr.bf16.mxu0 0
        %1041 = vmatmul.mubr.bf16.gmra.mxu0 %v982
        %v1042 = vpop.f32.mrf.mxu0
        %v1043 = vadd.f32 0.0, %v1042
        %v1044 = vpop.f32.mrf.mxu0
        %v1045 = vpop.f32.mrf.mxu0
        %v1046 = vadd.f32 0.0, %v1045
        %v1047 = vpop.f32.mrf.mxu0
        %1048 = vdwg.mxu0
        %v1049 = vadd.f32 %v960, %v1019
        %v1050 = vadd.f32 %v961, %v1022
        %v1051 = vadd.f32 %v962, %v1027
        %v1052 = vadd.f32 %v963, %v1030
        %v1053 = vadd.f32 %v964, %v1035
        %v1054 = vadd.f32 %v965, %v1038
        %v1055 = vadd.f32 %v966, %v1043
        %v1056 = vadd.f32 %v967, %v1046
        %1057 = vst [vmem:[#allocation5] sm:$0xff] %v1049
        %1058 = vst [vmem:[#allocation5 + $0x8] sm:$0xff] %v1050
        %1059 = vst [vmem:[#allocation5 + $0x10] sm:$0xff] %v1051
        %1060 = vst [vmem:[#allocation5 + $0x18] sm:$0xff] %v1052
        %1061 = vst [vmem:[#allocation5 + $0x20] sm:$0xff] %v1053
        %1062 = vst [vmem:[#allocation5 + $0x28] sm:$0xff] %v1054
        %1063 = vst [vmem:[#allocation5 + $0x30] sm:$0xff] %v1055
        %1064 = vst [vmem:[#allocation5 + $0x38] sm:$0xff] %v1056
        %1065 = vst.msk [vmem:[#allocation3] sm:$0xff] %vm903, %v759
        %1066 = vst.msk [vmem:[#allocation3 + $0x8] sm:$0xff] %vm903, %v760
        %1067 = vst.msk [vmem:[#allocation3 + $0x10] sm:$0xff] %vm903, %v761
        %1068 = vst.msk [vmem:[#allocation3 + $0x18] sm:$0xff] %vm903, %v762
        %1069 = vst.msk [vmem:[#allocation3 + $0x20] sm:$0xff] %vm903, %v763
        %1070 = vst.msk [vmem:[#allocation3 + $0x28] sm:$0xff] %vm903, %v764
        %1071 = vst.msk [vmem:[#allocation3 + $0x30] sm:$0xff] %vm903, %v765
        %1072 = vst.msk [vmem:[#allocation3 + $0x38] sm:$0xff] %vm903, %v766
        // Predicated region
        $region69: #{tpu_custom_call.1} parent=47 // pred_check
          %p1073 = pneg %p400
        $region70: #{tpu_custom_call.1} parent=47 // pred_check_branch
          %1075 = sbr.rel (%p1073) target = $region72
        $region71: #{tpu_custom_call.1} parent=47 // pred_region
          %v1076 = vld [vmem:[#allocation4] sm:$0xff]
          %v1077 = vld [vmem:[#allocation4 + $0x8] sm:$0xff]
          %v1078 = vld [vmem:[#allocation4 + $0x10] sm:$0xff]
          %v1079 = vld [vmem:[#allocation4 + $0x18] sm:$0xff]
          %v1080 = vld [vmem:[#allocation4 + $0x20] sm:$0xff]
          %v1081 = vld [vmem:[#allocation4 + $0x28] sm:$0xff]
          %v1082 = vld [vmem:[#allocation4 + $0x30] sm:$0xff]
          %v1083 = vld [vmem:[#allocation4 + $0x38] sm:$0xff]
          %v1084 = vrcp.pop %v1076
          %v1085 = vrcp.pop %v1077
          %v1086 = vrcp.pop %v1078
          %v1087 = vrcp.pop %v1079
          %v1088 = vrcp.pop %v1080
          %v1089 = vrcp.pop %v1081
          %v1090 = vrcp.pop %v1082
          %v1091 = vrcp.pop %v1083
          %v1092 = vld [vmem:[#allocation5] sm:$0xff]
          %v1093 = vld [vmem:[#allocation5 + $0x8] sm:$0xff]
          %v1094 = vld [vmem:[#allocation5 + $0x10] sm:$0xff]
          %v1095 = vld [vmem:[#allocation5 + $0x18] sm:$0xff]
          %v1096 = vld [vmem:[#allocation5 + $0x20] sm:$0xff]
          %v1097 = vld [vmem:[#allocation5 + $0x28] sm:$0xff]
          %v1098 = vld [vmem:[#allocation5 + $0x30] sm:$0xff]
          %v1099 = vld [vmem:[#allocation5 + $0x38] sm:$0xff]
          %1101 = vset.pattern.permute.xlu0 0
          %1102 = vperm.xlu0 %1101, %v1084
          %v1103 = vpop.permute.xlu0 %1102
          %1106 = vset.pattern.permute.xlu0 0
          %1107 = vperm.xlu0 %1106, %v1085
          %v1108 = vpop.permute.xlu0 %1107
          %1111 = vset.pattern.permute.xlu0 0
          %1112 = vperm.xlu0 %1111, %v1086
          %v1113 = vpop.permute.xlu0 %1112
          %1116 = vset.pattern.permute.xlu0 0
          %1117 = vperm.xlu0 %1116, %v1087
          %v1118 = vpop.permute.xlu0 %1117
          %1121 = vset.pattern.permute.xlu0 0
          %1122 = vperm.xlu0 %1121, %v1088
          %v1123 = vpop.permute.xlu0 %1122
          %1126 = vset.pattern.permute.xlu0 0
          %1127 = vperm.xlu0 %1126, %v1089
          %v1128 = vpop.permute.xlu0 %1127
          %1131 = vset.pattern.permute.xlu0 0
          %1132 = vperm.xlu0 %1131, %v1090
          %v1133 = vpop.permute.xlu0 %1132
          %1136 = vset.pattern.permute.xlu0 0
          %1137 = vperm.xlu0 %1136, %v1091
          %v1138 = vpop.permute.xlu0 %1137
          %v1140 = vmul.f32 %v1092, %v1103
          %v1141 = vmul.f32 %v1093, %v1108
          %v1142 = vmul.f32 %v1094, %v1113
          %v1143 = vmul.f32 %v1095, %v1118
          %v1144 = vmul.f32 %v1096, %v1123
          %v1145 = vmul.f32 %v1097, %v1128
          %v1146 = vmul.f32 %v1098, %v1133
          %v1147 = vmul.f32 %v1099, %v1138
          %v1148 = vpack.c.bf16 %v1141, %v1140
          %v1149 = vpack.c.bf16 %v1143, %v1142
          %v1150 = vpack.c.bf16 %v1145, %v1144
          %v1151 = vpack.c.bf16 %v1147, %v1146
          %v1152 = vld [vmem:[#allocation13] sm:$0xf]
          %v1153 = vld [vmem:[#allocation13 + $0x4] sm:$0xf]
          %v1154 = vld [vmem:[#allocation13 + $0x8] sm:$0xf]
          %v1155 = vld [vmem:[#allocation13 + $0xc] sm:$0xf]
          %v1156 = vld [vmem:[#allocation13 + $0x10] sm:$0xf]
          %v1157 = vld [vmem:[#allocation13 + $0x14] sm:$0xf]
          %v1158 = vld [vmem:[#allocation13 + $0x18] sm:$0xf]
          %v1159 = vld [vmem:[#allocation13 + $0x1c] sm:$0xf]
          %v1160 = vld [vmem:[#allocation13 + $0x20] sm:$0xf]
          %v1161 = vld [vmem:[#allocation13 + $0x24] sm:$0xf]
          %v1162 = vld [vmem:[#allocation13 + $0x28] sm:$0xf]
          %v1163 = vld [vmem:[#allocation13 + $0x2c] sm:$0xf]
          %v1164 = vld [vmem:[#allocation13 + $0x30] sm:$0xf]
          %v1165 = vld [vmem:[#allocation13 + $0x34] sm:$0xf]
          %v1166 = vld [vmem:[#allocation13 + $0x38] sm:$0xf]
          %v1167 = vld [vmem:[#allocation13 + $0x3c] sm:$0xf]
          %v1168 = vld [vmem:[%s5] sm:$0x1]
          %v1170 = vlaneseq
          %v1171 = vshrl.u32 %v1170, 7
          %v1172 = vsub.s32 0, %v1171
          %v1173 = vrot.slane %v1168, %v1172
          %v1191 = vunpack.c.l.b16 %v1152
          %v1192 = vunpack.c.l.b16 %v1153
          %v1193 = vunpack.c.l.b16 %v1154
          %v1194 = vunpack.c.l.b16 %v1155
          %v1195 = vunpack.c.l.b16 %v1156
          %v1196 = vunpack.c.l.b16 %v1157
          %v1197 = vunpack.c.l.b16 %v1158
          %v1198 = vunpack.c.l.b16 %v1159
          %v1199 = vunpack.c.l.b16 %v1160
          %v1200 = vunpack.c.l.b16 %v1161
          %v1201 = vunpack.c.l.b16 %v1162
          %v1202 = vunpack.c.l.b16 %v1163
          %v1203 = vunpack.c.l.b16 %v1164
          %v1204 = vunpack.c.l.b16 %v1165
          %v1205 = vunpack.c.l.b16 %v1166
          %v1206 = vunpack.c.l.b16 %v1167
          %v1207 = vpack.c.b16 %v1192, %v1191
          %v1208 = vpack.c.b16 %v1194, %v1193
          %v1209 = vpack.c.b16 %v1196, %v1195
          %v1210 = vpack.c.b16 %v1198, %v1197
          %v1211 = vpack.c.b16 %v1200, %v1199
          %v1212 = vpack.c.b16 %v1202, %v1201
          %v1213 = vpack.c.b16 %v1204, %v1203
          %v1214 = vpack.c.b16 %v1206, %v1205
          %1223 = vmatprep.subr.bf16.mxu0 0
          %1224 = vmatpush1.bf16.msra.mxu0 %v1214
          %1225 = vmatprep.subr.bf16.mxu0 0
          %1226 = vmatpush1.bf16.msra.mxu0 %v1213
          %1227 = vmatprep.subr.bf16.mxu0 0
          %1228 = vmatpush1.bf16.msra.mxu0 %v1212
          %1229 = vmatprep.subr.bf16.mxu0 0
          %1230 = vmatpush1.bf16.msra.mxu0 %v1211
          %1231 = vmatprep.subr.bf16.mxu0 0
          %1232 = vmatpush1.bf16.msra.mxu0 %v1210
          %1233 = vmatprep.subr.bf16.mxu0 0
          %1234 = vmatpush1.bf16.msra.mxu0 %v1209
          %1235 = vmatprep.subr.bf16.mxu0 0
          %1236 = vmatpush1.bf16.msra.mxu0 %v1208
          %1237 = vmatprep.subr.bf16.mxu0 0
          %1238 = vmatpush1.bf16.msra.mxu0 %v1207
          %1239 = vmatprep.subr.bf16.mxu0 0
          %1240 = vmatpush2.bf16.msra.mxu0 0
          %1241 = vmatprep.subr.bf16.mxu0 0
          %1242 = vmatpush2.bf16.msra.mxu0 0
          %1243 = vmatprep.subr.bf16.mxu0 0
          %1244 = vmatpush2.bf16.msra.mxu0 0
          %1245 = vmatprep.subr.bf16.mxu0 0
          %1246 = vmatpush2.bf16.msra.mxu0 0
          %1247 = vmatprep.subr.bf16.mxu0 0
          %1248 = vmatpush2.bf16.msra.mxu0 0
          %1249 = vmatprep.subr.bf16.mxu0 0
          %1250 = vmatpush2.bf16.msra.mxu0 0
          %1251 = vmatprep.subr.bf16.mxu0 0
          %1252 = vmatpush2.bf16.msra.mxu0 0
          %1253 = vmatprep.subr.bf16.mxu0 0
          %1254 = vmatpush2.bf16.msra.mxu0 0
          %1255 = vmatprep.mubr.bf16.mxu0 0
          %1256 = vmatmul.mubr.bf16.gmra.mxu0 %v1148
          %v1257 = vpop.f32.mrf.mxu0
          %v1258 = vadd.f32 %v1173, %v1257
          %v1259 = vpop.f32.mrf.mxu0
          %v1260 = vpop.f32.mrf.mxu0
          %v1261 = vadd.f32 %v1173, %v1260
          %v1262 = vpop.f32.mrf.mxu0
          %1263 = vmatprep.mubr.bf16.mxu0 0
          %1264 = vmatmul.mubr.bf16.gmra.mxu0 %v1149
          %v1265 = vpop.f32.mrf.mxu0
          %v1266 = vadd.f32 %v1173, %v1265
          %v1267 = vpop.f32.mrf.mxu0
          %v1268 = vpop.f32.mrf.mxu0
          %v1269 = vadd.f32 %v1173, %v1268
          %v1270 = vpop.f32.mrf.mxu0
          %1271 = vmatprep.mubr.bf16.mxu0 0
          %1272 = vmatmul.mubr.bf16.gmra.mxu0 %v1150
          %v1273 = vpop.f32.mrf.mxu0
          %v1274 = vadd.f32 %v1173, %v1273
          %v1275 = vpop.f32.mrf.mxu0
          %v1276 = vpop.f32.mrf.mxu0
          %v1277 = vadd.f32 %v1173, %v1276
          %v1278 = vpop.f32.mrf.mxu0
          %1279 = vmatprep.mubr.bf16.mxu0 0
          %1280 = vmatmul.mubr.bf16.gmra.mxu0 %v1151
          %v1281 = vpop.f32.mrf.mxu0
          %v1282 = vadd.f32 %v1173, %v1281
          %v1283 = vpop.f32.mrf.mxu0
          %v1284 = vpop.f32.mrf.mxu0
          %v1285 = vadd.f32 %v1173, %v1284
          %v1286 = vpop.f32.mrf.mxu0
          %1287 = vdwg.mxu0
          %s1288 = sld [smem:[#allocation6]]
          %v1289 = vstv %s1288
          %v1290 = vmul.f32 %v1289, %v1258
          %v1291 = vmul.f32 %v1289, %v1261
          %v1292 = vmul.f32 %v1289, %v1266
          %v1293 = vmul.f32 %v1289, %v1269
          %v1294 = vmul.f32 %v1289, %v1274
          %v1295 = vmul.f32 %v1289, %v1277
          %v1296 = vmul.f32 %v1289, %v1282
          %v1297 = vmul.f32 %v1289, %v1285
          %v1298 = vld [vmem:[%s343] sm:$0xff]
          %v1299 = vld [vmem:[%s343 + $0x8] sm:$0xff]
          %v1300 = vld [vmem:[%s343 + $0x10] sm:$0xff]
          %v1301 = vld [vmem:[%s343 + $0x18] sm:$0xff]
          %v1302 = vld [vmem:[%s343 + $0x20] sm:$0xff]
          %v1303 = vld [vmem:[%s343 + $0x28] sm:$0xff]
          %v1304 = vld [vmem:[%s343 + $0x30] sm:$0xff]
          %v1305 = vld [vmem:[%s343 + $0x38] sm:$0xff]
          %v1306 = vadd.f32 %v1290, %v1298
          %v1307 = vadd.f32 %v1291, %v1299
          %v1308 = vadd.f32 %v1292, %v1300
          %v1309 = vadd.f32 %v1293, %v1301
          %v1310 = vadd.f32 %v1294, %v1302
          %v1311 = vadd.f32 %v1295, %v1303
          %v1312 = vadd.f32 %v1296, %v1304
          %v1313 = vadd.f32 %v1297, %v1305
          %1314 = vst [vmem:[%s395] sm:$0xff] %v1306
          %1315 = vst [vmem:[%s395 + $0x8] sm:$0xff] %v1307
          %1316 = vst [vmem:[%s395 + $0x10] sm:$0xff] %v1308
          %1317 = vst [vmem:[%s395 + $0x18] sm:$0xff] %v1309
          %1318 = vst [vmem:[%s395 + $0x20] sm:$0xff] %v1310
          %1319 = vst [vmem:[%s395 + $0x28] sm:$0xff] %v1311
          %1320 = vst [vmem:[%s395 + $0x30] sm:$0xff] %v1312
          %1321 = vst [vmem:[%s395 + $0x38] sm:$0xff] %v1313
        $region72: #{tpu_custom_call.1} parent=47 // pred_fallthru
          _
        %s1322 = sand.u32 %s219, 1
        %s1323 = scalar_lea.sflag [#allocation9], %s1322
        %s1324 = sand.u32 %s219, 1
        %s1325 = smul.addr %s1324, 64
        %s1326 = scalar_lea.vmem [#allocation15], %s1325
        // Predicated region
        $region73: #{tpu_custom_call.1} parent=47 // pred_check
          %p1327 = pneg %p229
        $region74: #{tpu_custom_call.1} parent=47 // pred_check_branch
          %1329 = sbr.rel (%p1327) target = $region76
        $region75: #{tpu_custom_call.1} parent=47 // pred_region
          %s1330 = smul.u32 8, %s35
          %s1332 = ssub.s32 1024, 1024
          %1333 = vsyncadd %s1323, %s1332
          %s1334 = smul.addr %s34, 8
          %s1335 = sadd.s32 %s1330, %s1334
          %s1336 = smul.addr %s1335, 128
          %s1337 = scalar_lea.hbm %s7, %s1336
          %s1338 = sshll.u32 %s1326, 4
          %s1339 = int_to_ptr.vmem [resolvable:$true] %s1338
          %1344 = dma.vmem_to_hbm [thread:$0]  %s1339, 1024, %s1337, %s1323, 128, 128, 8
        $region76: #{tpu_custom_call.1} parent=47 // pred_fallthru
          _
      $region48: #{tpu_custom_call.1} parent=5 // pred_fallthru
        _
      %p1345 = scmp.le.s32.totalorder 2, %s24
      // Predicated region
      $region77: #{tpu_custom_call.1} parent=5 // pred_check
        %p1346 = pneg %p1345
      $region78: #{tpu_custom_call.1} parent=5 // pred_check_branch
        %1348 = sbr.rel (%p1346) target = $region80
      $region79: #{tpu_custom_call.1} parent=5 // pred_region
        %s1349 = ssub.s32 %s24, 2
        // Predicated region
        $region81: #{tpu_custom_call.1} parent=79 // pred_check
          %p1350 = pneg %p235
        $region82: #{tpu_custom_call.1} parent=79 // pred_check_branch
          %1352 = sbr.rel (%p1350) target = $region84
        $region83: #{tpu_custom_call.1} parent=79 // pred_region
          %s1353 = sand.u32 %s220, 1
          %s1354 = scalar_lea.sflag [#allocation9], %s1353
          %s1355 = sand.u32 %s220, 1
          %s1356 = smul.addr %s1355, 64
          %s1357 = scalar_lea.vmem [#allocation15], %s1356
          %1358 = dma.done %s1354, 1024
        $region84: #{tpu_custom_call.1} parent=79 // pred_fallthru
          _
      $region80: #{tpu_custom_call.1} parent=5 // pred_fallthru
        _
    $region6: #{tpu_custom_call.1} parent=1 // loop_footer
      %s28 = sadd.s32 1, %s24
    $region7: #{tpu_custom_call.1} parent=1 // loop_footer_branch
      %23 = sbr.rel target = $region3
    $region8: #{tpu_custom_call.1} parent=1 // loop_exit
      _
    %1359 = vsyncpa [#allocation8], 1
    %s1360 = scalar_lea.sflag [#allocation8], 1
    %1361 = vsyncpa %s1360, 1
    %1362 = vsyncpa [#allocation11], 1
    %s1363 = scalar_lea.sflag [#allocation11], 1
    %1364 = vsyncpa %s1363, 1
    %1365 = vsyncpa [#allocation14], 1
    %1366 = vsyncpa [#allocation9], 1
    %s1367 = scalar_lea.sflag [#allocation9], 1
    %1368 = vsyncpa %s1367, 1

</llo_original>
